<compile_context>
chip_gen: v7x
topology: tpu7x:2x2x1
jax: 0.10.0
libtpu: 0.0.40
codegen_flags: <defaults>
</compile_context>

<pallas_src>
import math
import functools

import jax
import jax.numpy as jnp
from jax.experimental import pallas as pl
from jax.experimental.pallas import tpu as pltpu


# exp(-x) rounds to 0 in IEEE f32 (subnormals kept, as in PyTorch CPU) once
# x > 150*ln(2) ~ 103.97 — mask with a compare instead of computing the exp.
_MASK_THRESHOLD = 150.0 * math.log(2.0)
_NEG_INF = -1e9
_F32 = 4


def _temporal_attn_kernel(x_ref, wqkv_ref, bqkv_ref, wo_ref, bo_ref,
                          dist_ref, thr_ref, out_ref,
                          q_s, k_s, v_s,
                          *, n_heads, d_k, q_tile, heads_per_chunk):
    d_model = n_heads * d_k
    qi = pl.program_id(1)

    # ---- once per batch element: fused QKV projection + head-major layout ----
    # (scale/temperature already folded into the Q columns of wqkv/bqkv)
    @pl.when(qi == 0)
    def _():
        x = x_ref[0]                                                      # (S, D)
        qkv = jnp.dot(x, wqkv_ref[...],
                      preferred_element_type=jnp.float32) + bqkv_ref[0]  # (S, 3D)
        k_t = qkv[:, d_model:2 * d_model].T                              # (D, S): K transposed once per batch
        for h in range(n_heads):                                         # layout-only copies
            q_s[h] = qkv[:, h * d_k:(h + 1) * d_k]
            k_s[h] = k_t[h * d_k:(h + 1) * d_k, :]                       # cheap sublane slice of K^T
            v_s[h] = qkv[:, 2 * d_model + h * d_k:2 * d_model + (h + 1) * d_k]

    # ---- per q-tile: head-chunked attention of (Hc,TQ,dk) queries vs full K/V ----
    qs = pl.multiple_of(qi * q_tile, q_tile)
    dist = dist_ref[...]                                                  # (1, TQ, S)

    out_acc = jnp.zeros((q_tile, d_model), jnp.float32)
    for c in range(n_heads // heads_per_chunk):
        hs = c * heads_per_chunk
        q = q_s[pl.ds(hs, heads_per_chunk), pl.ds(qs, q_tile), :]        # (Hc, TQ, dk)
        kt = k_s[pl.ds(hs, heads_per_chunk), :, :]                       # (Hc, dk, S)
        scores = jnp.einsum("hqd,hds->hqs", q, kt,
                            preferred_element_type=jnp.float32)          # (Hc, TQ, S)

        # temporal-decay mask: exp(-decay*dist) == 0  <=>  dist > threshold_h
        thr = thr_ref[pl.ds(hs, heads_per_chunk), :, :]                  # (Hc, 1, 1)
        scores = jnp.where(dist > thr, _NEG_INF, scores)

        # softmax over keys, normalization deferred past attn @ V
        m = jnp.max(scores, axis=-1, keepdims=True)
        p = jnp.exp(scores - m)
        l = jnp.sum(p, axis=-1, keepdims=True)                           # (Hc, TQ, 1)

        ctx = jnp.einsum("hqs,hsd->hqd", p,
                         v_s[pl.ds(hs, heads_per_chunk), :, :],
                         preferred_element_type=jnp.float32)             # (Hc, TQ, dk)
        ctx = ctx * pl.reciprocal(l, approx=False)    # exact: keeps the f32 1e-4 check

        # output projection for this head chunk, accumulated across chunks
        out_acc = out_acc + jnp.sum(
            jnp.einsum("hqd,hdm->hqm", ctx,
                       wo_ref[pl.ds(hs, heads_per_chunk), :, :],
                       preferred_element_type=jnp.float32),
            axis=0)

    out_ref[0] = out_acc + bo_ref[0]


# ---------------------------------------------------------------------------
# VMEM budgeting helpers
# ---------------------------------------------------------------------------

def _ceil_to(n, m):
    return -(-max(n, 1) // m) * m


def _vmem_bytes_estimate(S, D, H, d_k, q_tile, heads_chunk):
    """Rough per-step VMEM footprint (includes (8,128) padding) in bytes."""
    lane = lambda n: _ceil_to(n, 128)
    sub = lambda n: _ceil_to(n, 8)
    resident = (sub(D) * lane(3 * D)            # fused Wqkv
                + sub(1) * lane(3 * D)          # fused bias
                + H * sub(d_k) * lane(D)        # Wo head-split
                + sub(1) * lane(D)              # bo
                + H * sub(1) * lane(1))         # mask thresholds
    x_blk = sub(S) * lane(D)                    # x, single-buffered
    dist_blk = 2 * sub(q_tile) * lane(S)        # streamed, double-buffered
    out_blk = 2 * sub(q_tile) * lane(D)
    scratch = (2 * H * sub(S) * lane(d_k)       # Q, V scratch (lane = d_k)
               + H * sub(d_k) * lane(S))        # K^T scratch (lane = S, unpadded)
    temps = (2 * heads_chunk * sub(q_tile) * lane(S)    # scores + p
             + heads_chunk * sub(q_tile) * lane(d_k)    # ctx
             + heads_chunk * sub(q_tile) * lane(D)      # per-chunk projection
             + sub(q_tile) * lane(D))                   # output accumulator
    prologue = sub(S) * lane(3 * D) + sub(D) * lane(S)  # qkv temp + K^T temp
    return (resident + x_blk + dist_blk + out_blk + scratch
            + max(temps, prologue)) * _F32


def _vmem_capacity_bytes():
    try:
        cap = getattr(pltpu.get_tpu_info(), "vmem_capacity_bytes", None)
        if cap:
            return int(cap)
    except Exception:
        pass
    return 64 * 1024 * 1024          # conservative default (v7x per-TC VMEM)


# ---------------------------------------------------------------------------
# BlockSpec helpers
# ---------------------------------------------------------------------------

def _spec(shape, index_map, buffers=None):
    if buffers is None:
        return pl.BlockSpec(shape, index_map)
    try:
        return pl.BlockSpec(shape, index_map, pipeline_mode=pl.Buffered(buffers))
    except TypeError:                # older jax without pipeline_mode
        return pl.BlockSpec(shape, index_map)


def _resident(shape):
    """Constant-index blocks (weights/bias/thresholds): single-buffered."""
    return _spec(shape, lambda b, qi: (0,) * len(shape), buffers=1)


# ---------------------------------------------------------------------------
# Wrapper
# ---------------------------------------------------------------------------

def temporal_attention(x, params, time_distances, *, n_heads, temperature=1.0,
                       q_tile=None):
    """x: (B, S, D) f32, time_distances: (B, S, S) f32."""
    B, S, D = x.shape
    assert D % n_heads == 0
    d_k = D // n_heads
    q_mul = (1.0 / math.sqrt(d_k)) / temperature      # scale & temperature folded

    # Per-generation VMEM budget drives q_tile / head chunking / compiler limit.
    budget = int(_vmem_capacity_bytes() * 0.85)
    est = functools.partial(_vmem_bytes_estimate, S, D, n_heads, d_k)

    if q_tile is None:
        if S <= 128 or S % 128 != 0:
            q_tile = S
        else:
            q_tile = 128
            for cand in (512, 256):
                if S % cand == 0 and est(cand, 1) <= budget:
                    q_tile = cand
                    break
    assert S % q_tile == 0
    num_q_tiles = S // q_tile

    heads_per_chunk = 1
    for hc in sorted((d for d in range(1, n_heads + 1) if n_heads % d == 0),
                     reverse=True):
        if est(q_tile, hc) <= budget:
            heads_per_chunk = hc
            break
    # TODO(synk): if even heads_per_chunk == 1 exceeds the budget (very long S
    # on v7x), a KV-tiled inner loop with online softmax would be required.

    vmem_limit = int(min(budget,
                         max(32 * 1024 * 1024, est(q_tile, heads_per_chunk) * 1.25)))

    # Fuse the three projections into one (D, 3D) weight; fold the scale into
    # the Q columns of the weight AND bias (trace-time, free on device).
    wqkv = jnp.concatenate(
        [params["wq"].T * q_mul, params["wk"].T, params["wv"].T], axis=1)
    bqkv = jnp.concatenate(
        [params["bq"] * q_mul, params["bk"], params["bv"]])[None, :]
    wo_h = params["wo"].T.reshape(n_heads, d_k, D)
    bo = params["bo"][None, :]
    # Per-head mask thresholds: exp(-decay*dist)==0 (f32) iff dist > T/decay;
    # decay <= 0 can never produce an exact zero -> +inf (never masked).
    decay = params["decay_factors"].astype(jnp.float32)
    thr = jnp.where(decay > 0, _MASK_THRESHOLD / decay,
                    jnp.inf).reshape(n_heads, 1, 1).astype(jnp.float32)

    kernel = functools.partial(_temporal_attn_kernel, n_heads=n_heads, d_k=d_k,
                               q_tile=q_tile, heads_per_chunk=heads_per_chunk)

    grid_spec = pltpu.PrefetchScalarGridSpec(
        num_scalar_prefetch=0,
        grid=(B, num_q_tiles),                                    # q axis innermost
        in_specs=[
            _spec((1, S, D), lambda b, qi: (b, 0, 0), buffers=1),     # x (changes only with b)
            _resident((D, 3 * D)),                                    # fused Wqkv (scale folded)
            _resident((1, 3 * D)),                                    # fused bias
            _resident((n_heads, d_k, D)),                             # Wo, head-split
            _resident((1, D)),                                        # bo
            pl.BlockSpec((1, q_tile, S), lambda b, qi: (b, qi, 0)),   # time distances (streamed)
            _resident((n_heads, 1, 1)),                               # per-head mask thresholds
        ],
        out_specs=pl.BlockSpec((1, q_tile, D), lambda b, qi: (b, qi, 0)),
        scratch_shapes=[pltpu.VMEM((n_heads, S, d_k), jnp.float32),   # Q (head-major)
                        pltpu.VMEM((n_heads, d_k, S), jnp.float32),   # K^T (lane dim = S)
                        pltpu.VMEM((n_heads, S, d_k), jnp.float32)],  # V (head-major)
    )

    return pl.pallas_call(
        kernel,
        out_shape=jax.ShapeDtypeStruct((B, S, D), jnp.float32),
        grid_spec=grid_spec,
        compiler_params=pltpu.CompilerParams(
            dimension_semantics=("parallel", "arbitrary"),  # q axis carries K/V scratch
            vmem_limit_bytes=vmem_limit),
    )(x, wqkv, bqkv, wo_h, bo, time_distances, thr)


# ---------------------------------------------------------------------------
# Pure-JAX reference + init (mirrors the PyTorch module, eval mode)
# ---------------------------------------------------------------------------

def ref_temporal_attention(x, params, time_distances, *, n_heads, temperature=1.0):
    B, S, D = x.shape
    d_k = D // n_heads
    scale = 1.0 / math.sqrt(d_k)

    def lin(a, w, b):
        return a @ w.T + b

    Q = lin(x, params["wq"], params["bq"]).reshape(B, S, n_heads, d_k).transpose(0, 2, 1, 3)
    K = lin(x, params["wk"], params["bk"]).reshape(B, S, n_heads, d_k).transpose(0, 2, 1, 3)
    V = lin(x, params["wv"], params["bv"]).reshape(B, S, n_heads, d_k).transpose(0, 2, 1, 3)

    scores = jnp.einsum("bhqd,bhkd->bhqk", Q, K) * scale / temperature
    tmask = jnp.exp(-params["decay_factors"].reshape(1, n_heads, 1, 1)
                    * time_distances[:, None, :, :])
    scores = jnp.where(tmask == 0.0, -1e9, scores)
    attn = jax.nn.softmax(scores, axis=-1)
    ctx = jnp.einsum("bhqk,bhkd->bhqd", attn, V)
    ctx = ctx.transpose(0, 2, 1, 3).reshape(B, S, D)
    return lin(ctx, params["wo"], params["bo"])


def init_params(key, d_model, n_heads):
    """xavier_uniform-like weights, zero biases, ones decay (matches torch init)."""
    ks = jax.random.split(key, 4)
    bound = math.sqrt(6.0 / (d_model + d_model))

    def w(k):
        return jax.random.uniform(k, (d_model, d_model), jnp.float32, -bound, bound)

    zeros = jnp.zeros((d_model,), jnp.float32)
    return {
        "wq": w(ks[0]), "bq": zeros,
        "wk": w(ks[1]), "bk": zeros,
        "wv": w(ks[2]), "bv": zeros,
        "wo": w(ks[3]), "bo": zeros,
        "decay_factors": jnp.ones((n_heads,), jnp.float32),
        # time_bias exists in the torch module but is unused in forward()
        "time_bias": jnp.zeros((1, n_heads, 1, 1), jnp.float32),
    }


if __name__ == "__main__":
    B, S, D, H = 2, 8, 32, 4

    key = jax.random.PRNGKey(0)
    kx, kp = jax.random.split(key)

    x = jax.random.normal(kx, (B, S, D), jnp.float32)
    params = init_params(kp, D, H)

    # time distances: |t_i - t_j|, same for every batch element
    t = jnp.arange(S, dtype=jnp.float32)
    dist = jnp.abs(t[:, None] - t[None, :])
    time_distances = jnp.broadcast_to(dist, (B, S, S)).astype(jnp.float32)

    # Case 1: small distances — temporal mask never triggers.
    out = jax.block_until_ready(temporal_attention(x, params, time_distances, n_heads=H))
    ref = ref_temporal_attention(x, params, time_distances, n_heads=H)
    assert out.shape == (B, S, D)
    assert jnp.allclose(out, ref, atol=1e-4, rtol=1e-4), (
        f"max abs diff {float(jnp.max(jnp.abs(out - ref)))}")

    # Case 2: large distances — decay fully zeroes far positions (mask path).
    big = time_distances * 1000.0
    out2 = jax.block_until_ready(temporal_attention(x, params, big, n_heads=H))
    ref2 = ref_temporal_attention(x, params, big, n_heads=H)
    assert jnp.allclose(out2, ref2, atol=1e-4, rtol=1e-4), (
        f"max abs diff (masked case) {float(jnp.max(jnp.abs(out2 - ref2)))}")

    print("KERNEL_OK")
</pallas_src>

<mosaic_0001>
module attributes {stable_mosaic.version = 11 : i64} {
  func.func @_temporal_attn_kernel(%arg0: i32, %arg1: i32, %arg2: memref<1x8x32xf32, #tpu.memory_space<vmem>>, %arg3: memref<32x96xf32, #tpu.memory_space<vmem>>, %arg4: memref<1x96xf32, #tpu.memory_space<vmem>>, %arg5: memref<4x8x32xf32, #tpu.memory_space<vmem>>, %arg6: memref<1x32xf32, #tpu.memory_space<vmem>>, %arg7: memref<1x8x8xf32, #tpu.memory_space<vmem>>, %arg8: memref<4x1x1xf32, #tpu.memory_space<vmem>>, %arg9: memref<1x8x32xf32, #tpu.memory_space<vmem>>, %arg10: memref<4x8x8xf32, #tpu.memory_space<vmem>>, %arg11: memref<4x8x8xf32, #tpu.memory_space<vmem>>, %arg12: memref<4x8x8xf32, #tpu.memory_space<vmem>>) attributes {dimension_semantics = [#tpu.dimension_semantics<parallel>, #tpu.dimension_semantics<arbitrary>], iteration_bounds = array<i64: 2, 1>, scalar_prefetch = 0 : i64, scratch_operands = 3 : i64, tpu.core_type = #tpu.core_type<tc>, window_params = [{pipeline_mode = #tpu.pipeline_mode<synchronous>, transform_indices = @transform_0, window_bounds = array<i64: 1, 8, 32>}, {pipeline_mode = #tpu.pipeline_mode<synchronous>, transform_indices = @transform_1, window_bounds = array<i64: 32, 96>}, {pipeline_mode = #tpu.pipeline_mode<synchronous>, transform_indices = @transform_2, window_bounds = array<i64: 1, 96>}, {pipeline_mode = #tpu.pipeline_mode<synchronous>, transform_indices = @transform_3, window_bounds = array<i64: 4, 8, 32>}, {pipeline_mode = #tpu.pipeline_mode<synchronous>, transform_indices = @transform_4, window_bounds = array<i64: 1, 32>}, {transform_indices = @transform_5, window_bounds = array<i64: 1, 8, 8>}, {pipeline_mode = #tpu.pipeline_mode<synchronous>, transform_indices = @transform_6, window_bounds = array<i64: 4, 1, 1>}, {transform_indices = @transform_7, window_bounds = array<i64: 1, 8, 32>}]} {
    %c0_i32 = arith.constant 0 : i32
    %0 = arith.cmpi eq, %arg1, %c0_i32 : i32
    %1 = arith.extui %0 : i1 to i32
    %c0_i32_0 = arith.constant 0 : i32
    %2 = arith.cmpi ne, %1, %c0_i32_0 : i32
    scf.if %2 {
      %c0_29 = arith.constant 0 : index
      %c0_30 = arith.constant 0 : index
      %c0_31 = arith.constant 0 : index
      %41 = vector.load %arg2[%c0_29, %c0_30, %c0_31] : memref<1x8x32xf32, #tpu.memory_space<vmem>>, vector<1x8x32xf32>
      %42 = vector.shape_cast %41 : vector<1x8x32xf32> to vector<8x32xf32>
      %c0_32 = arith.constant 0 : index
      %c0_33 = arith.constant 0 : index
      %43 = vector.load %arg3[%c0_32, %c0_33] : memref<32x96xf32, #tpu.memory_space<vmem>>, vector<32x96xf32>
      %cst_34 = arith.constant dense<0.000000e+00> : vector<8x96xf32>
      %44 = tpu.matmul %42, %43, %cst_34 {dimension_numbers = #tpu.dot_dimension_numbers<[1], [0], [0], [1], [0, 0, 1, 1], [], []>} : vector<8x32xf32>, vector<32x96xf32>, vector<8x96xf32> -> vector<8x96xf32>
      %c0_35 = arith.constant 0 : index
      %c0_36 = arith.constant 0 : index
      %45 = vector.load %arg4[%c0_35, %c0_36] : memref<1x96xf32, #tpu.memory_space<vmem>>, vector<1x96xf32>
      %46 = vector.shape_cast %45 : vector<1x96xf32> to vector<96xf32>
      %47 = vector.shape_cast %46 : vector<96xf32> to vector<1x96xf32>
      %48 = vector.broadcast %47 : vector<1x96xf32> to vector<8x96xf32>
      %49 = arith.addf %44, %48 : vector<8x96xf32>
      %50 = vector.extract_strided_slice %49 {offsets = [0, 32], sizes = [8, 32], strides = [1, 1]} : vector<8x96xf32> to vector<8x32xf32>
      %51 = tpu.transpose %50, [1, 0] : vector<8x32xf32> -> vector<32x8xf32>
      %52 = vector.extract_strided_slice %49 {offsets = [0, 0], sizes = [8, 8], strides = [1, 1]} : vector<8x96xf32> to vector<8x8xf32>
      %c0_37 = arith.constant 0 : index
      %c0_38 = arith.constant 0 : index
      %c0_39 = arith.constant 0 : index
      %53 = vector.load %arg10[%c0_37, %c0_38, %c0_39] : memref<4x8x8xf32, #tpu.memory_space<vmem>>, vector<1x8x8xf32>
      %54 = vector.shape_cast %53 : vector<1x8x8xf32> to vector<8x8xf32>
      %55 = vector.shape_cast %52 : vector<8x8xf32> to vector<1x8x8xf32>
      tpu.vector_store %arg10[%c0_37, %c0_38, %c0_39], %55 {strides = array<i32>} : memref<4x8x8xf32, #tpu.memory_space<vmem>>, vector<1x8x8xf32>,
      %56 = vector.extract_strided_slice %51 {offsets = [0, 0], sizes = [8, 8], strides = [1, 1]} : vector<32x8xf32> to vector<8x8xf32>
      %c0_40 = arith.constant 0 : index
      %c0_41 = arith.constant 0 : index
      %c0_42 = arith.constant 0 : index
      %57 = vector.load %arg11[%c0_40, %c0_41, %c0_42] : memref<4x8x8xf32, #tpu.memory_space<vmem>>, vector<1x8x8xf32>
      %58 = vector.shape_cast %57 : vector<1x8x8xf32> to vector<8x8xf32>
      %59 = vector.shape_cast %56 : vector<8x8xf32> to vector<1x8x8xf32>
      tpu.vector_store %arg11[%c0_40, %c0_41, %c0_42], %59 {strides = array<i32>} : memref<4x8x8xf32, #tpu.memory_space<vmem>>, vector<1x8x8xf32>,
      %60 = vector.extract_strided_slice %49 {offsets = [0, 64], sizes = [8, 8], strides = [1, 1]} : vector<8x96xf32> to vector<8x8xf32>
      %c0_43 = arith.constant 0 : index
      %c0_44 = arith.constant 0 : index
      %c0_45 = arith.constant 0 : index
      %61 = vector.load %arg12[%c0_43, %c0_44, %c0_45] : memref<4x8x8xf32, #tpu.memory_space<vmem>>, vector<1x8x8xf32>
      %62 = vector.shape_cast %61 : vector<1x8x8xf32> to vector<8x8xf32>
      %63 = vector.shape_cast %60 : vector<8x8xf32> to vector<1x8x8xf32>
      tpu.vector_store %arg12[%c0_43, %c0_44, %c0_45], %63 {strides = array<i32>} : memref<4x8x8xf32, #tpu.memory_space<vmem>>, vector<1x8x8xf32>,
      %64 = vector.extract_strided_slice %49 {offsets = [0, 8], sizes = [8, 8], strides = [1, 1]} : vector<8x96xf32> to vector<8x8xf32>
      %c1 = arith.constant 1 : index
      %c0_46 = arith.constant 0 : index
      %c0_47 = arith.constant 0 : index
      %65 = vector.load %arg10[%c1, %c0_46, %c0_47] : memref<4x8x8xf32, #tpu.memory_space<vmem>>, vector<1x8x8xf32>
      %66 = vector.shape_cast %65 : vector<1x8x8xf32> to vector<8x8xf32>
      %67 = vector.shape_cast %64 : vector<8x8xf32> to vector<1x8x8xf32>
      tpu.vector_store %arg10[%c1, %c0_46, %c0_47], %67 {strides = array<i32>} : memref<4x8x8xf32, #tpu.memory_space<vmem>>, vector<1x8x8xf32>,
      %68 = vector.extract_strided_slice %51 {offsets = [8, 0], sizes = [8, 8], strides = [1, 1]} : vector<32x8xf32> to vector<8x8xf32>
      %c1_48 = arith.constant 1 : index
      %c0_49 = arith.constant 0 : index
      %c0_50 = arith.constant 0 : index
      %69 = vector.load %arg11[%c1_48, %c0_49, %c0_50] : memref<4x8x8xf32, #tpu.memory_space<vmem>>, vector<1x8x8xf32>
      %70 = vector.shape_cast %69 : vector<1x8x8xf32> to vector<8x8xf32>
      %71 = vector.shape_cast %68 : vector<8x8xf32> to vector<1x8x8xf32>
      tpu.vector_store %arg11[%c1_48, %c0_49, %c0_50], %71 {strides = array<i32>} : memref<4x8x8xf32, #tpu.memory_space<vmem>>, vector<1x8x8xf32>,
      %72 = vector.extract_strided_slice %49 {offsets = [0, 72], sizes = [8, 8], strides = [1, 1]} : vector<8x96xf32> to vector<8x8xf32>
      %c1_51 = arith.constant 1 : index
      %c0_52 = arith.constant 0 : index
      %c0_53 = arith.constant 0 : index
      %73 = vector.load %arg12[%c1_51, %c0_52, %c0_53] : memref<4x8x8xf32, #tpu.memory_space<vmem>>, vector<1x8x8xf32>
      %74 = vector.shape_cast %73 : vector<1x8x8xf32> to vector<8x8xf32>
      %75 = vector.shape_cast %72 : vector<8x8xf32> to vector<1x8x8xf32>
      tpu.vector_store %arg12[%c1_51, %c0_52, %c0_53], %75 {strides = array<i32>} : memref<4x8x8xf32, #tpu.memory_space<vmem>>, vector<1x8x8xf32>,
      %76 = vector.extract_strided_slice %49 {offsets = [0, 16], sizes = [8, 8], strides = [1, 1]} : vector<8x96xf32> to vector<8x8xf32>
      %c2 = arith.constant 2 : index
      %c0_54 = arith.constant 0 : index
      %c0_55 = arith.constant 0 : index
      %77 = vector.load %arg10[%c2, %c0_54, %c0_55] : memref<4x8x8xf32, #tpu.memory_space<vmem>>, vector<1x8x8xf32>
      %78 = vector.shape_cast %77 : vector<1x8x8xf32> to vector<8x8xf32>
      %79 = vector.shape_cast %76 : vector<8x8xf32> to vector<1x8x8xf32>
      tpu.vector_store %arg10[%c2, %c0_54, %c0_55], %79 {strides = array<i32>} : memref<4x8x8xf32, #tpu.memory_space<vmem>>, vector<1x8x8xf32>,
      %80 = vector.extract_strided_slice %51 {offsets = [16, 0], sizes = [8, 8], strides = [1, 1]} : vector<32x8xf32> to vector<8x8xf32>
      %c2_56 = arith.constant 2 : index
      %c0_57 = arith.constant 0 : index
      %c0_58 = arith.constant 0 : index
      %81 = vector.load %arg11[%c2_56, %c0_57, %c0_58] : memref<4x8x8xf32, #tpu.memory_space<vmem>>, vector<1x8x8xf32>
      %82 = vector.shape_cast %81 : vector<1x8x8xf32> to vector<8x8xf32>
      %83 = vector.shape_cast %80 : vector<8x8xf32> to vector<1x8x8xf32>
      tpu.vector_store %arg11[%c2_56, %c0_57, %c0_58], %83 {strides = array<i32>} : memref<4x8x8xf32, #tpu.memory_space<vmem>>, vector<1x8x8xf32>,
      %84 = vector.extract_strided_slice %49 {offsets = [0, 80], sizes = [8, 8], strides = [1, 1]} : vector<8x96xf32> to vector<8x8xf32>
      %c2_59 = arith.constant 2 : index
      %c0_60 = arith.constant 0 : index
      %c0_61 = arith.constant 0 : index
      %85 = vector.load %arg12[%c2_59, %c0_60, %c0_61] : memref<4x8x8xf32, #tpu.memory_space<vmem>>, vector<1x8x8xf32>
      %86 = vector.shape_cast %85 : vector<1x8x8xf32> to vector<8x8xf32>
      %87 = vector.shape_cast %84 : vector<8x8xf32> to vector<1x8x8xf32>
      tpu.vector_store %arg12[%c2_59, %c0_60, %c0_61], %87 {strides = array<i32>} : memref<4x8x8xf32, #tpu.memory_space<vmem>>, vector<1x8x8xf32>,
      %88 = vector.extract_strided_slice %49 {offsets = [0, 24], sizes = [8, 8], strides = [1, 1]} : vector<8x96xf32> to vector<8x8xf32>
      %c3 = arith.constant 3 : index
      %c0_62 = arith.constant 0 : index
      %c0_63 = arith.constant 0 : index
      %89 = vector.load %arg10[%c3, %c0_62, %c0_63] : memref<4x8x8xf32, #tpu.memory_space<vmem>>, vector<1x8x8xf32>
      %90 = vector.shape_cast %89 : vector<1x8x8xf32> to vector<8x8xf32>
      %91 = vector.shape_cast %88 : vector<8x8xf32> to vector<1x8x8xf32>
      tpu.vector_store %arg10[%c3, %c0_62, %c0_63], %91 {strides = array<i32>} : memref<4x8x8xf32, #tpu.memory_space<vmem>>, vector<1x8x8xf32>,
      %92 = vector.extract_strided_slice %51 {offsets = [24, 0], sizes = [8, 8], strides = [1, 1]} : vector<32x8xf32> to vector<8x8xf32>
      %c3_64 = arith.constant 3 : index
      %c0_65 = arith.constant 0 : index
      %c0_66 = arith.constant 0 : index
      %93 = vector.load %arg11[%c3_64, %c0_65, %c0_66] : memref<4x8x8xf32, #tpu.memory_space<vmem>>, vector<1x8x8xf32>
      %94 = vector.shape_cast %93 : vector<1x8x8xf32> to vector<8x8xf32>
      %95 = vector.shape_cast %92 : vector<8x8xf32> to vector<1x8x8xf32>
      tpu.vector_store %arg11[%c3_64, %c0_65, %c0_66], %95 {strides = array<i32>} : memref<4x8x8xf32, #tpu.memory_space<vmem>>, vector<1x8x8xf32>,
      %96 = vector.extract_strided_slice %49 {offsets = [0, 88], sizes = [8, 8], strides = [1, 1]} : vector<8x96xf32> to vector<8x8xf32>
      %c3_67 = arith.constant 3 : index
      %c0_68 = arith.constant 0 : index
      %c0_69 = arith.constant 0 : index
      %97 = vector.load %arg12[%c3_67, %c0_68, %c0_69] : memref<4x8x8xf32, #tpu.memory_space<vmem>>, vector<1x8x8xf32>
      %98 = vector.shape_cast %97 : vector<1x8x8xf32> to vector<8x8xf32>
      %99 = vector.shape_cast %96 : vector<8x8xf32> to vector<1x8x8xf32>
      tpu.vector_store %arg12[%c3_67, %c0_68, %c0_69], %99 {strides = array<i32>} : memref<4x8x8xf32, #tpu.memory_space<vmem>>, vector<1x8x8xf32>,
    } else {
    }
    %c8_i32 = arith.constant 8 : i32
    %3 = arith.muli %arg1, %c8_i32 : i32
    %4 = tpu.assume_multiple %3, 8 : i32
    %c0 = arith.constant 0 : index
    %c0_1 = arith.constant 0 : index
    %c0_2 = arith.constant 0 : index
    %5 = vector.load %arg7[%c0, %c0_1, %c0_2] : memref<1x8x8xf32, #tpu.memory_space<vmem>>, vector<1x8x8xf32>
    %cst = arith.constant 0.000000e+00 : f32
    %6 = vector.broadcast %cst : f32 to vector<8x32xf32>
    %c0_3 = arith.constant 0 : index
    %7 = arith.index_cast %4 : i32 to index
    %c0_4 = arith.constant 0 : index
    %8 = vector.load %arg10[%c0_3, %7, %c0_4] : memref<4x8x8xf32, #tpu.memory_space<vmem>>, vector<4x8x8xf32>
    %c0_5 = arith.constant 0 : index
    %c0_6 = arith.constant 0 : index
    %c0_7 = arith.constant 0 : index
    %9 = vector.load %arg11[%c0_5, %c0_6, %c0_7] : memref<4x8x8xf32, #tpu.memory_space<vmem>>, vector<4x8x8xf32>
    "tpu.trace_start"() <{level = 10 : i32, message = "hqd,hds->hqs"}> : () -> ()
    %cst_8 = arith.constant dense<0.000000e+00> : vector<4x8x8xf32>
    %10 = tpu.matmul %8, %9, %cst_8 {dimension_numbers = #tpu.dot_dimension_numbers<[2], [1], [1], [2], [0, 0, 0, 1, 1, 2], [0], [0]>} : vector<4x8x8xf32>, vector<4x8x8xf32>, vector<4x8x8xf32> -> vector<4x8x8xf32>
    "tpu.trace_stop"() : () -> ()
    %c0_9 = arith.constant 0 : index
    %c0_10 = arith.constant 0 : index
    %c0_11 = arith.constant 0 : index
    %11 = vector.load %arg8[%c0_9, %c0_10, %c0_11] : memref<4x1x1xf32, #tpu.memory_space<vmem>>, vector<4x1x1xf32>
    %12 = vector.broadcast %5 : vector<1x8x8xf32> to vector<4x8x8xf32>
    %13 = vector.broadcast %11 : vector<4x1x1xf32> to vector<4x8x8xf32>
    %14 = arith.cmpf ogt, %12, %13 : vector<4x8x8xf32>
    %cst_12 = arith.constant -1.000000e+09 : f32
    %15 = vector.broadcast %cst_12 : f32 to vector<4x8x8xf32>
    %16 = arith.select %14, %15, %10 : vector<4x8x8xi1>, vector<4x8x8xf32>
    %cst_13 = arith.constant dense<0xFF800000> : vector<4x8xf32>
    %17 = vector.multi_reduction <maximumf>, %16, %cst_13 [2] : vector<4x8x8xf32> to vector<4x8xf32>
    %18 = vector.shape_cast %17 : vector<4x8xf32> to vector<4x8x1xf32>
    %19 = vector.broadcast %18 : vector<4x8x1xf32> to vector<4x8x8xf32>
    %20 = arith.subf %16, %19 : vector<4x8x8xf32>
    %21 = math.exp %20 : vector<4x8x8xf32>
    %cst_14 = arith.constant dense<0.000000e+00> : vector<4x8xf32>
    %22 = vector.multi_reduction <add>, %21, %cst_14 [2] : vector<4x8x8xf32> to vector<4x8xf32>
    %23 = vector.shape_cast %22 : vector<4x8xf32> to vector<4x8x1xf32>
    %c0_15 = arith.constant 0 : index
    %c0_16 = arith.constant 0 : index
    %c0_17 = arith.constant 0 : index
    %24 = vector.load %arg12[%c0_15, %c0_16, %c0_17] : memref<4x8x8xf32, #tpu.memory_space<vmem>>, vector<4x8x8xf32>
    "tpu.trace_start"() <{level = 10 : i32, message = "hqs,hsd->hqd"}> : () -> ()
    %cst_18 = arith.constant dense<0.000000e+00> : vector<4x8x8xf32>
    %25 = tpu.matmul %21, %24, %cst_18 {dimension_numbers = #tpu.dot_dimension_numbers<[2], [1], [1], [2], [0, 0, 0, 1, 1, 2], [0], [0]>} : vector<4x8x8xf32>, vector<4x8x8xf32>, vector<4x8x8xf32> -> vector<4x8x8xf32>
    "tpu.trace_stop"() : () -> ()
    %26 = tpu.reciprocal %23 : vector<4x8x1xf32> -> vector<4x8x1xf32>
    %27 = vector.broadcast %26 : vector<4x8x1xf32> to vector<4x8x8xf32>
    %28 = arith.mulf %25, %27 : vector<4x8x8xf32>
    %c0_19 = arith.constant 0 : index
    %c0_20 = arith.constant 0 : index
    %c0_21 = arith.constant 0 : index
    %29 = vector.load %arg5[%c0_19, %c0_20, %c0_21] : memref<4x8x32xf32, #tpu.memory_space<vmem>>, vector<4x8x32xf32>
    "tpu.trace_start"() <{level = 10 : i32, message = "hqd,hdm->hqm"}> : () -> ()
    %cst_22 = arith.constant dense<0.000000e+00> : vector<4x8x32xf32>
    %30 = tpu.matmul %28, %29, %cst_22 {dimension_numbers = #tpu.dot_dimension_numbers<[2], [1], [1], [2], [0, 0, 0, 1, 1, 2], [0], [0]>} : vector<4x8x8xf32>, vector<4x8x32xf32>, vector<4x8x32xf32> -> vector<4x8x32xf32>
    "tpu.trace_stop"() : () -> ()
    %cst_23 = arith.constant dense<0.000000e+00> : vector<8x32xf32>
    %31 = vector.multi_reduction <add>, %30, %cst_23 [0] : vector<4x8x32xf32> to vector<8x32xf32>
    %32 = arith.addf %6, %31 : vector<8x32xf32>
    %c0_24 = arith.constant 0 : index
    %c0_25 = arith.constant 0 : index
    %33 = vector.load %arg6[%c0_24, %c0_25] : memref<1x32xf32, #tpu.memory_space<vmem>>, vector<1x32xf32>
    %34 = vector.shape_cast %33 : vector<1x32xf32> to vector<32xf32>
    %35 = vector.shape_cast %34 : vector<32xf32> to vector<1x32xf32>
    %36 = vector.broadcast %35 : vector<1x32xf32> to vector<8x32xf32>
    %37 = arith.addf %32, %36 : vector<8x32xf32>
    %c0_26 = arith.constant 0 : index
    %c0_27 = arith.constant 0 : index
    %c0_28 = arith.constant 0 : index
    %38 = vector.load %arg9[%c0_26, %c0_27, %c0_28] : memref<1x8x32xf32, #tpu.memory_space<vmem>>, vector<1x8x32xf32>
    %39 = vector.shape_cast %38 : vector<1x8x32xf32> to vector<8x32xf32>
    %40 = vector.shape_cast %37 : vector<8x32xf32> to vector<1x8x32xf32>
    tpu.vector_store %arg9[%c0_26, %c0_27, %c0_28], %40 {strides = array<i32>} : memref<1x8x32xf32, #tpu.memory_space<vmem>>, vector<1x8x32xf32>,
    return
  }
  func.func @transform_0(%arg0: i32, %arg1: i32) -> (i32, i32, i32) {
    %c0_i32 = arith.constant 0 : i32
    %c0_i32_0 = arith.constant 0 : i32
    %c0_i32_1 = arith.constant 0 : i32
    return %arg0, %c0_i32, %c0_i32_0 : i32, i32, i32
  }
  func.func @transform_1(%arg0: i32, %arg1: i32) -> (i32, i32) {
    %c0_i32 = arith.constant 0 : i32
    %c0_i32_0 = arith.constant 0 : i32
    %c0_i32_1 = arith.constant 0 : i32
    return %c0_i32, %c0_i32_0 : i32, i32
  }
  func.func @transform_2(%arg0: i32, %arg1: i32) -> (i32, i32) {
    %c0_i32 = arith.constant 0 : i32
    %c0_i32_0 = arith.constant 0 : i32
    %c0_i32_1 = arith.constant 0 : i32
    return %c0_i32, %c0_i32_0 : i32, i32
  }
  func.func @transform_3(%arg0: i32, %arg1: i32) -> (i32, i32, i32) {
    %c0_i32 = arith.constant 0 : i32
    %c0_i32_0 = arith.constant 0 : i32
    %c0_i32_1 = arith.constant 0 : i32
    %c0_i32_2 = arith.constant 0 : i32
    return %c0_i32, %c0_i32_0, %c0_i32_1 : i32, i32, i32
  }
  func.func @transform_4(%arg0: i32, %arg1: i32) -> (i32, i32) {
    %c0_i32 = arith.constant 0 : i32
    %c0_i32_0 = arith.constant 0 : i32
    %c0_i32_1 = arith.constant 0 : i32
    return %c0_i32, %c0_i32_0 : i32, i32
  }
  func.func @transform_5(%arg0: i32, %arg1: i32) -> (i32, i32, i32) {
    %c0_i32 = arith.constant 0 : i32
    %c0_i32_0 = arith.constant 0 : i32
    return %arg0, %arg1, %c0_i32 : i32, i32, i32
  }
  func.func @transform_6(%arg0: i32, %arg1: i32) -> (i32, i32, i32) {
    %c0_i32 = arith.constant 0 : i32
    %c0_i32_0 = arith.constant 0 : i32
    %c0_i32_1 = arith.constant 0 : i32
    %c0_i32_2 = arith.constant 0 : i32
    return %c0_i32, %c0_i32_0, %c0_i32_1 : i32, i32, i32
  }
  func.func @transform_7(%arg0: i32, %arg1: i32) -> (i32, i32, i32) {
    %c0_i32 = arith.constant 0 : i32
    %c0_i32_0 = arith.constant 0 : i32
    return %arg0, %arg1, %c0_i32 : i32, i32, i32
  }
}

</mosaic_0001>

<llo_original>
// kernel: tpu_custom_call.1
$region0: #{tpu_custom_call.1}
  #allocation0 [shape = 'u32[]', space=smem, size = 0x4, offset = 0x4, fixed_abs, tag = 'smem constant byte address 0x4 - core index']
  #allocation1 [shape = 'u32[144,128]{1,0:T(1,128)}', space=vmem, size = 0x12000, scoped, tag = 'internal scratch']
  #allocation2 [shape = 'f32[4,8,8]{2,1,0:T(8,128)}', space=vmem, size = 0x4000, scoped, tag = 'scratch operand']
  #allocation3 [shape = 'f32[4,8,8]{2,1,0:T(8,128)}', space=vmem, size = 0x4000, scoped, tag = 'scratch operand']
  #allocation4 [shape = 'f32[4,8,8]{2,1,0:T(8,128)}', space=vmem, size = 0x4000, scoped, tag = 'scratch operand']
  %s0 = inlined_call_operand.hbm [shape: f32[2,8,32], index: 0, kind: input, shape index: {}]
  %s1 = inlined_call_operand.hbm [shape: f32[32,96], index: 1, kind: input, shape index: {}]
  %s2 = inlined_call_operand.vmem [shape: f32[1,96], index: 2, kind: input, shape index: {}]
  %s3 = inlined_call_operand.hbm [shape: f32[4,8,32], index: 3, kind: input, shape index: {}]
  %s4 = inlined_call_operand.vmem [shape: f32[1,32], index: 4, kind: input, shape index: {}]
  %s5 = inlined_call_operand.vmem [shape: f32[2,8,8], index: 5, kind: input, shape index: {}]
  %s6 = inlined_call_operand.vmem [shape: f32[4,1,1], index: 6, kind: input, shape index: {}]
  %s7 = inlined_call_operand.hbm [shape: f32[2,8,32], index: 7, kind: output, shape index: {}]
  %s8 = sld [smem:[#allocation0]]
  $region77: #{tpu_custom_call.1} parent=0
    _
  %s10 = ssub.s32 1, %s8
  %s11 = scalar_select 0, %s10, %s8
  $region1: #{tpu_custom_call.1} parent=0
    #allocation5 [shape = 'u8[4096]{0}', space=vmem, size = 0x1000, scoped, tag = 'input window, operand 0, single buffered']
    #allocation6 [shape = 's32[2]{0}', space=sflag, size = 0x8, scoped, tag = 'scoped memory for tpu_custom_call.1']
    #allocation7 [shape = 's32[2]{0}', space=sflag, size = 0x8, scoped, tag = 'scoped memory for tpu_custom_call.1']
    #allocation8 [shape = 'u8[16384]{0}', space=vmem, size = 0x4000, scoped, tag = 'input window, operand 1, single buffered']
    #allocation9 [shape = 's32[1]{0}', space=sflag, size = 0x4, scoped, tag = 'scoped memory for tpu_custom_call.1']
    #allocation10 [shape = 'u8[16384]{0}', space=vmem, size = 0x4000, scoped, tag = 'input window, operand 3, single buffered']
    #allocation11 [shape = 'u8[8192]{0}', space=vmem, size = 0x2000, scoped, tag = 'output window, operand 0']
    %12 = vsyncpa [#allocation6], 0
    %13 = vsyncpa [#allocation9], 0
    %14 = vsyncpa [#allocation7], 0
    %s15 = scalar_lea.sflag [#allocation7], 1
    %16 = vsyncpa %s15, 0
    loop: start=0, step=1, limit=4
    $region2: #{tpu_custom_call.1} parent=1 // loop_pre_header
      _
    $region3: #{tpu_custom_call.1} parent=1 // loop_header
      %s18 = sphi 0, %s22
      %p19 = scmp.ge.s32.totalorder %s18, 4
      %s25 = sphi 0, %s37
      %s26 = sphi 0, %s33
      %s27 = sphi 0, %s25
      %s28 = sphi 0, %s26
      %s29 = sphi 0, %s27
      %s30 = sphi 0, %s28
      %s40 = sphi 0, %s42
      %s43 = sphi 0, %s40
      %s44 = sphi 0, %s43
      %s60 = sphi 0, %s44
      %s64 = sphi 0, %s64
      %s66 = sphi 0, %s64
      %s67 = sphi 0, %s66
      %s81 = sphi 0, %s67
      %s85 = sphi 0, %s85
      %s87 = sphi 0, %s85
      %s88 = sphi 0, %s87
      %s102 = sphi 0, %s88
      %s106 = sphi 0, %s106
      %s108 = sphi 0, %s106
      %s109 = sphi 0, %s108
      %s123 = sphi 0, %s109
      %s127 = sphi 0, %s127
      %s129 = sphi 0, %s127
      %s130 = sphi 0, %s129
      %s144 = sphi 0, %s130
      %s152 = sphi 0, %s154
      %s155 = sphi 0, %s152
      %s156 = sphi 0, %s155
      %s172 = sphi 0, %s156
      %s176 = sphi 0, %s176
      %s178 = sphi 0, %s176
      %s179 = sphi 0, %s178
      %s193 = sphi 0, %s179
      %s201 = sphi 0, %s203
      %s204 = sphi 0, %s201
      %s205 = sphi 0, %s204
      %s221 = sphi 0, %s205
    $region4: #{tpu_custom_call.1} parent=1 // loop_header_branch
      %21 = sbr.rel (%p19) target = $region8
    $region5: #{tpu_custom_call.1} parent=1 // loop_body
      %s23 = ssub.s32 %s18, 1
      %s24 = ssub.s32 %s18, 2
      %s31 = sadd.s32 1, %s26
      %p32 = scmp.ge.s32.totalorder %s31, 1
      %s33 = scalar_select %p32, 0, %s31
      %s34 = sadd.s32 1, %s25
      %s35 = scalar_select %p32, %s34, %s25
      %p36 = scmp.ge.s32.totalorder %s35, 2
      %s37 = scalar_select %p36, 0, %s35
      %s38 = ssub.s32 %s25, %s37
      %p39 = scmp.eq.s32.totalorder %s38, 0
      %s41 = sadd.s32 %s40, 1
      %s42 = scalar_select %p39, %s40, %s41
      %p45 = pneg %p39
      %p46 = scmp.eq.s32.totalorder %s18, 1
      %p47 = por %p45, %p46
      %p48 = scmp.ne.s32.totalorder %s40, %s43
      %p49 = scmp.eq.s32.totalorder %s18, 0
      %p50 = por %p48, %p49
      %p51 = scmp.ne.s32.totalorder %s40, %s43
      %p52 = scmp.eq.s32.totalorder %s23, 1
      %p53 = por %p51, %p52
      %p54 = scmp.ne.s32.totalorder %s43, %s44
      %p55 = scmp.eq.s32.totalorder %s23, 0
      %p56 = por %p54, %p55
      %p57 = scmp.ne.s32.totalorder %s43, %s44
      %p58 = scmp.eq.s32.totalorder %s24, 1
      %p59 = por %p57, %p58
      %p61 = scmp.ne.s32.totalorder %s44, %s60
      %p62 = scmp.eq.s32.totalorder %s24, 0
      %p63 = por %p61, %p62
      %s65 = sadd.s32 %s64, 1
      %p68 = scmp.eq.s32.totalorder %s18, 1
      %p69 = scmp.ne.s32.totalorder %s64, %s66
      %p70 = scmp.eq.s32.totalorder %s18, 0
      %p71 = por %p69, %p70
      %p72 = scmp.ne.s32.totalorder %s64, %s66
      %p73 = scmp.eq.s32.totalorder %s23, 1
      %p74 = por %p72, %p73
      %p75 = scmp.ne.s32.totalorder %s66, %s67
      %p76 = scmp.eq.s32.totalorder %s23, 0
      %p77 = por %p75, %p76
      %p78 = scmp.ne.s32.totalorder %s66, %s67
      %p79 = scmp.eq.s32.totalorder %s24, 1
      %p80 = por %p78, %p79
      %p82 = scmp.ne.s32.totalorder %s67, %s81
      %p83 = scmp.eq.s32.totalorder %s24, 0
      %p84 = por %p82, %p83
      %s86 = sadd.s32 %s85, 1
      %p89 = scmp.eq.s32.totalorder %s18, 1
      %p90 = scmp.ne.s32.totalorder %s85, %s87
      %p91 = scmp.eq.s32.totalorder %s18, 0
      %p92 = por %p90, %p91
      %p93 = scmp.ne.s32.totalorder %s85, %s87
      %p94 = scmp.eq.s32.totalorder %s23, 1
      %p95 = por %p93, %p94
      %p96 = scmp.ne.s32.totalorder %s87, %s88
      %p97 = scmp.eq.s32.totalorder %s23, 0
      %p98 = por %p96, %p97
      %p99 = scmp.ne.s32.totalorder %s87, %s88
      %p100 = scmp.eq.s32.totalorder %s24, 1
      %p101 = por %p99, %p100
      %p103 = scmp.ne.s32.totalorder %s88, %s102
      %p104 = scmp.eq.s32.totalorder %s24, 0
      %p105 = por %p103, %p104
      %s107 = sadd.s32 %s106, 1
      %p110 = scmp.eq.s32.totalorder %s18, 1
      %p111 = scmp.ne.s32.totalorder %s106, %s108
      %p112 = scmp.eq.s32.totalorder %s18, 0
      %p113 = por %p111, %p112
      %p114 = scmp.ne.s32.totalorder %s106, %s108
      %p115 = scmp.eq.s32.totalorder %s23, 1
      %p116 = por %p114, %p115
      %p117 = scmp.ne.s32.totalorder %s108, %s109
      %p118 = scmp.eq.s32.totalorder %s23, 0
      %p119 = por %p117, %p118
      %p120 = scmp.ne.s32.totalorder %s108, %s109
      %p121 = scmp.eq.s32.totalorder %s24, 1
      %p122 = por %p120, %p121
      %p124 = scmp.ne.s32.totalorder %s109, %s123
      %p125 = scmp.eq.s32.totalorder %s24, 0
      %p126 = por %p124, %p125
      %s128 = sadd.s32 %s127, 1
      %p131 = scmp.eq.s32.totalorder %s18, 1
      %p132 = scmp.ne.s32.totalorder %s127, %s129
      %p133 = scmp.eq.s32.totalorder %s18, 0
      %p134 = por %p132, %p133
      %p135 = scmp.ne.s32.totalorder %s127, %s129
      %p136 = scmp.eq.s32.totalorder %s23, 1
      %p137 = por %p135, %p136
      %p138 = scmp.ne.s32.totalorder %s129, %s130
      %p139 = scmp.eq.s32.totalorder %s23, 0
      %p140 = por %p138, %p139
      %p141 = scmp.ne.s32.totalorder %s129, %s130
      %p142 = scmp.eq.s32.totalorder %s24, 1
      %p143 = por %p141, %p142
      %p145 = scmp.ne.s32.totalorder %s130, %s144
      %p146 = scmp.eq.s32.totalorder %s24, 0
      %p147 = por %p145, %p146
      %s148 = ssub.s32 %s25, %s37
      %s149 = ssub.s32 %s26, %s33
      %s150 = sor.u32 %s148, %s149
      %p151 = scmp.eq.s32.totalorder %s150, 0
      %s153 = sadd.s32 %s152, 1
      %s154 = scalar_select %p151, %s152, %s153
      %p157 = pneg %p151
      %p158 = scmp.eq.s32.totalorder %s18, 1
      %p159 = por %p157, %p158
      %p160 = scmp.ne.s32.totalorder %s152, %s155
      %p161 = scmp.eq.s32.totalorder %s18, 0
      %p162 = por %p160, %p161
      %p163 = scmp.ne.s32.totalorder %s152, %s155
      %p164 = scmp.eq.s32.totalorder %s23, 1
      %p165 = por %p163, %p164
      %p166 = scmp.ne.s32.totalorder %s155, %s156
      %p167 = scmp.eq.s32.totalorder %s23, 0
      %p168 = por %p166, %p167
      %p169 = scmp.ne.s32.totalorder %s155, %s156
      %p170 = scmp.eq.s32.totalorder %s24, 1
      %p171 = por %p169, %p170
      %p173 = scmp.ne.s32.totalorder %s156, %s172
      %p174 = scmp.eq.s32.totalorder %s24, 0
      %p175 = por %p173, %p174
      %s177 = sadd.s32 %s176, 1
      %p180 = scmp.eq.s32.totalorder %s18, 1
      %p181 = scmp.ne.s32.totalorder %s176, %s178
      %p182 = scmp.eq.s32.totalorder %s18, 0
      %p183 = por %p181, %p182
      %p184 = scmp.ne.s32.totalorder %s176, %s178
      %p185 = scmp.eq.s32.totalorder %s23, 1
      %p186 = por %p184, %p185
      %p187 = scmp.ne.s32.totalorder %s178, %s179
      %p188 = scmp.eq.s32.totalorder %s23, 0
      %p189 = por %p187, %p188
      %p190 = scmp.ne.s32.totalorder %s178, %s179
      %p191 = scmp.eq.s32.totalorder %s24, 1
      %p192 = por %p190, %p191
      %p194 = scmp.ne.s32.totalorder %s179, %s193
      %p195 = scmp.eq.s32.totalorder %s24, 0
      %p196 = por %p194, %p195
      %s197 = ssub.s32 %s25, %s37
      %s198 = ssub.s32 %s26, %s33
      %s199 = sor.u32 %s197, %s198
      %p200 = scmp.eq.s32.totalorder %s199, 0
      %s202 = sadd.s32 %s201, 1
      %s203 = scalar_select %p200, %s201, %s202
      %p206 = pneg %p200
      %p207 = scmp.eq.s32.totalorder %s18, 1
      %p208 = por %p206, %p207
      %p209 = scmp.ne.s32.totalorder %s201, %s204
      %p210 = scmp.eq.s32.totalorder %s18, 0
      %p211 = por %p209, %p210
      %p212 = scmp.ne.s32.totalorder %s201, %s204
      %p213 = scmp.eq.s32.totalorder %s23, 1
      %p214 = por %p212, %p213
      %p215 = scmp.ne.s32.totalorder %s204, %s205
      %p216 = scmp.eq.s32.totalorder %s23, 0
      %p217 = por %p215, %p216
      %p218 = scmp.ne.s32.totalorder %s204, %s205
      %p219 = scmp.eq.s32.totalorder %s24, 1
      %p220 = por %p218, %p219
      %p222 = scmp.ne.s32.totalorder %s205, %s221
      %p223 = scmp.eq.s32.totalorder %s24, 0
      %p224 = por %p222, %p223
      %p225 = scmp.le.s32.totalorder 1, %s18
      %p226 = scmp.lt.s32.totalorder %s18, 3
      %p227 = pnand %p225, %p226
      %p228 = pneg %p227
      // Predicated region
      $region9: #{tpu_custom_call.1} parent=5 // pred_check
        _
      $region10: #{tpu_custom_call.1} parent=5 // pred_check_branch
        %230 = sbr.rel (%p227) target = $region12
      $region11: #{tpu_custom_call.1} parent=5 // pred_region
        %s231 = ssub.s32 %s18, 1
        // Predicated region
        $region13: #{tpu_custom_call.1} parent=11 // pred_check
          %p232 = pneg %p56
        $region14: #{tpu_custom_call.1} parent=11 // pred_check_branch
          %234 = sbr.rel (%p232) target = $region16
        $region15: #{tpu_custom_call.1} parent=11 // pred_region
          %s236 = ssub.s32 128, 128
          %237 = vsyncadd [#allocation6], %s236
          %s238 = smul.addr %s27, 128
          %s239 = scalar_lea.hbm %s0, %s238
          %s241 = sshll.u32 [#allocation5], 4
          %s242 = int_to_ptr.vmem [resolvable:$true] %s241
          %244 = dma.hbm_to_vmem [thread:$0]  %s239, 128, %s242, [#allocation6]
        $region16: #{tpu_custom_call.1} parent=11 // pred_fallthru
          _
        // Predicated region
        $region17: #{tpu_custom_call.1} parent=11 // pred_check
          %p245 = pneg %p77
        $region18: #{tpu_custom_call.1} parent=11 // pred_check_branch
          %247 = sbr.rel (%p245) target = $region20
        $region19: #{tpu_custom_call.1} parent=11 // pred_region
          %s249 = ssub.s32 512, 512
          %250 = vsyncadd [#allocation9], %s249
          %s251 = sshll.u32 [#allocation8], 4
          %s252 = int_to_ptr.vmem [resolvable:$true] %s251
          %257 = dma.hbm_to_vmem [thread:$0]  %s1, 512, %s252, [#allocation9], 128, 128, 8
        $region20: #{tpu_custom_call.1} parent=11 // pred_fallthru
          _
        // Predicated region
        $region21: #{tpu_custom_call.1} parent=11 // pred_check
          %p258 = pneg %p98
        $region22: #{tpu_custom_call.1} parent=11 // pred_check_branch
          %260 = sbr.rel (%p258) target = $region24
        $region23: #{tpu_custom_call.1} parent=11 // pred_region
          _
        $region24: #{tpu_custom_call.1} parent=11 // pred_fallthru
          _
        // Predicated region
        $region25: #{tpu_custom_call.1} parent=11 // pred_check
          %p261 = pneg %p119
        $region26: #{tpu_custom_call.1} parent=11 // pred_check_branch
          %263 = sbr.rel (%p261) target = $region28
        $region27: #{tpu_custom_call.1} parent=11 // pred_region
          %s265 = ssub.s32 512, 512
          %266 = vsyncadd [#allocation9], %s265
          %s267 = sshll.u32 [#allocation10], 4
          %s268 = int_to_ptr.vmem [resolvable:$true] %s267
          %273 = dma.hbm_to_vmem [thread:$0]  %s3, 512, %s268, [#allocation9], 128, 128, 8
        $region28: #{tpu_custom_call.1} parent=11 // pred_fallthru
          _
        // Predicated region
        $region29: #{tpu_custom_call.1} parent=11 // pred_check
          %p274 = pneg %p140
        $region30: #{tpu_custom_call.1} parent=11 // pred_check_branch
          %276 = sbr.rel (%p274) target = $region32
        $region31: #{tpu_custom_call.1} parent=11 // pred_region
          _
        $region32: #{tpu_custom_call.1} parent=11 // pred_fallthru
          _
        // Predicated region
        $region33: #{tpu_custom_call.1} parent=11 // pred_check
          %p277 = pneg %p189
        $region34: #{tpu_custom_call.1} parent=11 // pred_check_branch
          %279 = sbr.rel (%p277) target = $region36
        $region35: #{tpu_custom_call.1} parent=11 // pred_region
          _
        $region36: #{tpu_custom_call.1} parent=11 // pred_fallthru
          _
      $region12: #{tpu_custom_call.1} parent=5 // pred_fallthru
        _
      %p280 = scmp.lt.s32.totalorder %s18, 2
      // Predicated region
      $region37: #{tpu_custom_call.1} parent=5 // pred_check
        %p281 = pneg %p280
      $region38: #{tpu_custom_call.1} parent=5 // pred_check_branch
        %283 = sbr.rel (%p281) target = $region40
      $region39: #{tpu_custom_call.1} parent=5 // pred_region
        // Predicated region
        $region41: #{tpu_custom_call.1} parent=39 // pred_check
          %p284 = pneg %p162
        $region42: #{tpu_custom_call.1} parent=39 // pred_check_branch
          %286 = sbr.rel (%p284) target = $region44
        $region43: #{tpu_custom_call.1} parent=39 // pred_region
          %p287 = scmp.lt.s32.totalorder %s25, 1
          %s288 = scalar_select %p287, %s25, 1
          %p289 = scmp.lt.s32.totalorder %s26, 0
          %s290 = scalar_select %p289, %s26, 0
          %s291 = sadd.s32 %s290, %s288
          %s292 = smul.addr %s291, 8
          %s293 = scalar_lea.vmem %s5, %s292
        $region44: #{tpu_custom_call.1} parent=39 // pred_fallthru
          _
      $region40: #{tpu_custom_call.1} parent=5 // pred_fallthru
        _
      %p294 = scmp.le.s32.totalorder 1, %s18
      %p295 = scmp.lt.s32.totalorder %s18, 3
      %p296 = pnand %p294, %p295
      %p297 = pneg %p296
      // Predicated region
      $region45: #{tpu_custom_call.1} parent=5 // pred_check
        _
      $region46: #{tpu_custom_call.1} parent=5 // pred_check_branch
        %299 = sbr.rel (%p296) target = $region48
      $region47: #{tpu_custom_call.1} parent=5 // pred_region
        %s300 = ssub.s32 %s18, 1
        // Predicated region
        $region49: #{tpu_custom_call.1} parent=47 // pred_check
          %p301 = pneg %p56
        $region50: #{tpu_custom_call.1} parent=47 // pred_check_branch
          %303 = sbr.rel (%p301) target = $region52
        $region51: #{tpu_custom_call.1} parent=47 // pred_region
          %304 = dma.done [#allocation6], 128
        $region52: #{tpu_custom_call.1} parent=47 // pred_fallthru
          _
        // Predicated region
        $region53: #{tpu_custom_call.1} parent=47 // pred_check
          %p305 = pneg %p77
        $region54: #{tpu_custom_call.1} parent=47 // pred_check_branch
          %307 = sbr.rel (%p305) target = $region56
        $region55: #{tpu_custom_call.1} parent=47 // pred_region
          %308 = dma.done [#allocation9], 512
        $region56: #{tpu_custom_call.1} parent=47 // pred_fallthru
          _
        // Predicated region
        $region57: #{tpu_custom_call.1} parent=47 // pred_check
          %p309 = pneg %p119
        $region58: #{tpu_custom_call.1} parent=47 // pred_check_branch
          %311 = sbr.rel (%p309) target = $region60
        $region59: #{tpu_custom_call.1} parent=47 // pred_region
          %312 = dma.done [#allocation9], 512
        $region60: #{tpu_custom_call.1} parent=47 // pred_fallthru
          _
        %p313 = pneg %p56
        %p314 = pneg %p53
        %p315 = pneg %p77
        %p316 = pneg %p74
        %p317 = pneg %p98
        %p318 = pneg %p95
        %p319 = pneg %p119
        %p320 = pneg %p116
        %p321 = pneg %p140
        %p322 = pneg %p137
        %p323 = scmp.lt.s32.totalorder %s27, 1
        %s324 = scalar_select %p323, %s27, 1
        %p325 = scmp.lt.s32.totalorder %s28, 0
        %s326 = scalar_select %p325, %s28, 0
        %s327 = sadd.s32 %s326, %s324
        %s328 = smul.addr %s327, 8
        %s329 = scalar_lea.vmem %s5, %s328
        %p330 = pneg %p168
        %p331 = pneg %p165
        %p332 = pneg %p189
        %p333 = pneg %p186
        %p334 = pneg %p217
        %p335 = pneg %p214
        %s336 = sand.u32 %s204, 1
        %s337 = scalar_lea.sflag [#allocation7], %s336
        %s338 = sand.u32 %s204, 1
        %s339 = smul.addr %s338, 8
        %s340 = scalar_lea.vmem [#allocation11], %s339
        %p341 = scmp.lt.s32.totalorder %s27, 1
        %s342 = scalar_select %p341, %s27, 1
        %p343 = scmp.lt.s32.totalorder %s28, 0
        %s344 = scalar_select %p343, %s28, 0
        %s345 = sadd.s32 %s344, %s342
        %s346 = smul.addr %s345, 8
        %s347 = scalar_lea.vmem %s5, %s346
        %p348 = scmp.eq.s32.totalorder %s28, 0
        // Predicated region
        $region61: #{tpu_custom_call.1} parent=47 // pred_check
          %p349 = pneg %p348
        $region62: #{tpu_custom_call.1} parent=47 // pred_check_branch
          %351 = sbr.rel (%p349) target = $region64
        $region63: #{tpu_custom_call.1} parent=47 // pred_region
          %v352 = vld [vmem:[#allocation5] sm:$0xff]
          %v353 = vld [vmem:[#allocation8] sm:$0xff]
          %v354 = vld [vmem:[#allocation8 + $0x8] sm:$0xff]
          %v355 = vld [vmem:[#allocation8 + $0x10] sm:$0xff]
          %v356 = vld [vmem:[#allocation8 + $0x18] sm:$0xff]
          %v357 = vld [vmem:[%s2] sm:$0x1]
          %v359 = vlaneseq
          %v360 = vshrl.u32 %v359, 7
          %v361 = vsub.s32 0, %v360
          %v362 = vrot.slane %v357, %v361
          %vm364 = vcmask 261120
          %v366 = vsel %vm364, %v352, 0
          %368 = vmatprep.subr.mxu0 0.0
          %369 = vmatpush1.msra.mxu0 %v353
          %370 = vmatprep.subr.mxu0 0.0
          %371 = vmatpush1.msra.mxu0 %v354
          %372 = vmatprep.subr.mxu0 0.0
          %373 = vmatpush1.msra.mxu0 %v355
          %374 = vmatprep.subr.mxu0 0.0
          %375 = vmatpush1.msra.mxu0 %v356
          %376 = vmatprep.subr.mxu0 0.0
          %377 = vmatpush1.msra.mxu0 0.0
          %378 = vmatprep.subr.mxu0 0.0
          %379 = vmatpush1.msra.mxu0 0.0
          %380 = vmatprep.subr.mxu0 0.0
          %381 = vmatpush1.msra.mxu0 0.0
          %382 = vmatprep.subr.mxu0 0.0
          %383 = vmatpush1.msra.mxu0 0.0
          %384 = vmatprep.subr.mxu0 0.0
          %385 = vmatpush1.msra.mxu0 0.0
          %386 = vmatprep.subr.mxu0 0.0
          %387 = vmatpush1.msra.mxu0 0.0
          %388 = vmatprep.subr.mxu0 0.0
          %389 = vmatpush1.msra.mxu0 0.0
          %390 = vmatprep.subr.mxu0 0.0
          %391 = vmatpush1.msra.mxu0 0.0
          %392 = vmatprep.subr.mxu0 0.0
          %393 = vmatpush1.msra.mxu0 0.0
          %394 = vmatprep.subr.mxu0 0.0
          %395 = vmatpush1.msra.mxu0 0.0
          %396 = vmatprep.subr.mxu0 0.0
          %397 = vmatpush1.msra.mxu0 0.0
          %398 = vmatprep.subr.mxu0 0.0
          %399 = vmatpush1.msra.mxu0 0.0
          %400 = vmatprep.subr.mxu0 0.0
          %401 = vmatpush1.msra.mxu0 0.0
          %402 = vmatprep.subr.mxu0 0.0
          %403 = vmatpush1.msra.mxu0 0.0
          %404 = vmatprep.subr.mxu0 0.0
          %405 = vmatpush1.msra.mxu0 0.0
          %406 = vmatprep.subr.mxu0 0.0
          %407 = vmatpush1.msra.mxu0 0.0
          %408 = vmatprep.subr.mxu0 0.0
          %409 = vmatpush1.msra.mxu0 0.0
          %410 = vmatprep.subr.mxu0 0.0
          %411 = vmatpush1.msra.mxu0 0.0
          %412 = vmatprep.subr.mxu0 0.0
          %413 = vmatpush1.msra.mxu0 0.0
          %414 = vmatprep.subr.mxu0 0.0
          %415 = vmatpush1.msra.mxu0 0.0
          %416 = vmatprep.subr.mxu0 0.0
          %417 = vmatpush1.msra.mxu0 0.0
          %418 = vmatprep.subr.mxu0 0.0
          %419 = vmatpush1.msra.mxu0 0.0
          %420 = vmatprep.subr.mxu0 0.0
          %421 = vmatpush1.msra.mxu0 0.0
          %422 = vmatprep.subr.mxu0 0.0
          %423 = vmatpush1.msra.mxu0 0.0
          %424 = vmatprep.subr.mxu0 0.0
          %425 = vmatpush1.msra.mxu0 0.0
          %426 = vmatprep.subr.mxu0 0.0
          %427 = vmatpush1.msra.mxu0 0.0
          %428 = vmatprep.subr.mxu0 0.0
          %429 = vmatpush1.msra.mxu0 0.0
          %430 = vmatprep.subr.mxu0 0.0
          %431 = vmatpush1.msra.mxu0 0.0
          %432 = vmatprep.mubr.f32.mxu0 0.0
          %433 = vmatmul.mubr.f32.gmra.mrb[0].mxu0 %v366
          %v434 = vpop.f32.mrb[0].mxu0
          %v435 = vadd.f32 %v362, %v434
          %v436 = vpop.f32.mrb[0].mxu0
          %437 = vdwg.mxu0
          %439 = vrot.lane.b32.xlu0 %v435, 96
          %v440 = vpop.permute.xlu0 %439
          %442 = vxpose.xlu0.b32.start [1/16] %v440, 128
          %443 = vxpose.xlu0.b32.cont [2/16] 0.0, 128
          %444 = vxpose.xlu0.b32.cont [3/16] 0.0, 128
          %445 = vxpose.xlu0.b32.cont [4/16] 0.0, 128
          %446 = vxpose.xlu0.b32.cont [5/16] 0.0, 128
          %447 = vxpose.xlu0.b32.cont [6/16] 0.0, 128
          %448 = vxpose.xlu0.b32.cont [7/16] 0.0, 128
          %449 = vxpose.xlu0.b32.cont [8/16] 0.0, 128
          %450 = vxpose.xlu0.b32.cont [9/16] 0.0, 128
          %451 = vxpose.xlu0.b32.cont [10/16] 0.0, 128
          %452 = vxpose.xlu0.b32.cont [11/16] 0.0, 128
          %453 = vxpose.xlu0.b32.cont [12/16] 0.0, 128
          %454 = vxpose.xlu0.b32.cont [13/16] 0.0, 128
          %455 = vxpose.xlu0.b32.cont [14/16] 0.0, 128
          %456 = vxpose.xlu0.b32.cont [15/16] 0.0, 128
          %457 = vxpose.xlu0.b32.end [16/16] 0.0, 128
          %v458 = vpop.trf.xlu0
          %v459 = vpop.trf.xlu0
          %v460 = vpop.trf.xlu0
          %v461 = vpop.trf.xlu0
          %v462 = vpop.trf.xlu0
          %v463 = vpop.trf.xlu0
          %v464 = vpop.trf.xlu0
          %v465 = vpop.trf.xlu0
          %v466 = vpop.trf.xlu0
          %v467 = vpop.trf.xlu0
          %v468 = vpop.trf.xlu0
          %v469 = vpop.trf.xlu0
          %v470 = vpop.trf.xlu0
          %v471 = vpop.trf.xlu0
          %v472 = vpop.trf.xlu0
          %v473 = vpop.trf.xlu0
          %vm474 = vcmask 64512
          %475 = vst.msk [vmem:[#allocation2] sm:$0xff] %vm474, %v435
          %476 = vst.msk [vmem:[#allocation3] sm:$0xff] %vm474, %v458
          %477 = vrot.lane.b32.xlu0 %v435, 64
          %v478 = vpop.permute.xlu0 %477
          %480 = vst.msk [vmem:[#allocation4] sm:$0xff] %vm474, %v478
          %481 = vrot.lane.b32.xlu0 %v435, 120
          %v482 = vpop.permute.xlu0 %481
          %s484 = scalar_lea.vmem [#allocation2], 8
          %485 = vst.msk [vmem:[%s484] sm:$0xff] %vm474, %v482
          %s486 = scalar_lea.vmem [#allocation3], 8
          %487 = vst.msk [vmem:[%s486] sm:$0xff] %vm474, %v459
          %488 = vrot.lane.b32.xlu0 %v435, 56
          %v489 = vpop.permute.xlu0 %488
          %s491 = scalar_lea.vmem [#allocation4], 8
          %492 = vst.msk [vmem:[%s491] sm:$0xff] %vm474, %v489
          %493 = vrot.lane.b32.xlu0 %v435, 112
          %v494 = vpop.permute.xlu0 %493
          %s496 = scalar_lea.vmem [#allocation2], 16
          %497 = vst.msk [vmem:[%s496] sm:$0xff] %vm474, %v494
          %s498 = scalar_lea.vmem [#allocation3], 16
          %499 = vst.msk [vmem:[%s498] sm:$0xff] %vm474, %v460
          %500 = vrot.lane.b32.xlu0 %v435, 48
          %v501 = vpop.permute.xlu0 %500
          %s503 = scalar_lea.vmem [#allocation4], 16
          %504 = vst.msk [vmem:[%s503] sm:$0xff] %vm474, %v501
          %505 = vrot.lane.b32.xlu0 %v435, 104
          %v506 = vpop.permute.xlu0 %505
          %s508 = scalar_lea.vmem [#allocation2], 24
          %509 = vst.msk [vmem:[%s508] sm:$0xff] %vm474, %v506
          %s510 = scalar_lea.vmem [#allocation3], 24
          %511 = vst.msk [vmem:[%s510] sm:$0xff] %vm474, %v461
          %512 = vrot.lane.b32.xlu0 %v435, 40
          %v513 = vpop.permute.xlu0 %512
          %s515 = scalar_lea.vmem [#allocation4], 24
          %516 = vst.msk [vmem:[%s515] sm:$0xff] %vm474, %v513
        $region64: #{tpu_custom_call.1} parent=47 // pred_fallthru
          _
        %s517 = smul.u32 %s28, 8
        %v518 = vld [vmem:[%s347] sm:$0xff]
        %s519 = scalar_lea.vmem [#allocation2], %s517
        %v520 = vld [vmem:[%s519] sm:$0xff]
        %v521 = vld [vmem:[%s519 + $0x8] sm:$0xff]
        %v522 = vld [vmem:[%s519 + $0x10] sm:$0xff]
        %v523 = vld [vmem:[%s519 + $0x18] sm:$0xff]
        %v524 = vld [vmem:[#allocation3] sm:$0xff]
        %v525 = vld [vmem:[#allocation3 + $0x8] sm:$0xff]
        %v526 = vld [vmem:[#allocation3 + $0x10] sm:$0xff]
        %v527 = vld [vmem:[#allocation3 + $0x18] sm:$0xff]
        %vm528 = vcmask 64512
        %v530 = vsel %vm528, %v520, 0
        %532 = vmatprep.subr.mxu0 0.0
        %533 = vmatpush1.msra.mxu0 %v524
        %534 = vmatprep.subr.mxu0 0.0
        %535 = vmatpush1.msra.mxu0 0.0
        %536 = vmatprep.subr.mxu0 0.0
        %537 = vmatpush1.msra.mxu0 0.0
        %538 = vmatprep.subr.mxu0 0.0
        %539 = vmatpush1.msra.mxu0 0.0
        %540 = vmatprep.subr.mxu0 0.0
        %541 = vmatpush1.msra.mxu0 0.0
        %542 = vmatprep.subr.mxu0 0.0
        %543 = vmatpush1.msra.mxu0 0.0
        %544 = vmatprep.subr.mxu0 0.0
        %545 = vmatpush1.msra.mxu0 0.0
        %546 = vmatprep.subr.mxu0 0.0
        %547 = vmatpush1.msra.mxu0 0.0
        %548 = vmatprep.subr.mxu0 0.0
        %549 = vmatpush1.msra.mxu0 0.0
        %550 = vmatprep.subr.mxu0 0.0
        %551 = vmatpush1.msra.mxu0 0.0
        %552 = vmatprep.subr.mxu0 0.0
        %553 = vmatpush1.msra.mxu0 0.0
        %554 = vmatprep.subr.mxu0 0.0
        %555 = vmatpush1.msra.mxu0 0.0
        %556 = vmatprep.subr.mxu0 0.0
        %557 = vmatpush1.msra.mxu0 0.0
        %558 = vmatprep.subr.mxu0 0.0
        %559 = vmatpush1.msra.mxu0 0.0
        %560 = vmatprep.subr.mxu0 0.0
        %561 = vmatpush1.msra.mxu0 0.0
        %562 = vmatprep.subr.mxu0 0.0
        %563 = vmatpush1.msra.mxu0 0.0
        %564 = vmatprep.subr.mxu0 0.0
        %565 = vmatpush1.msra.mxu0 0.0
        %566 = vmatprep.subr.mxu0 0.0
        %567 = vmatpush1.msra.mxu0 0.0
        %568 = vmatprep.subr.mxu0 0.0
        %569 = vmatpush1.msra.mxu0 0.0
        %570 = vmatprep.subr.mxu0 0.0
        %571 = vmatpush1.msra.mxu0 0.0
        %572 = vmatprep.subr.mxu0 0.0
        %573 = vmatpush1.msra.mxu0 0.0
        %574 = vmatprep.subr.mxu0 0.0
        %575 = vmatpush1.msra.mxu0 0.0
        %576 = vmatprep.subr.mxu0 0.0
        %577 = vmatpush1.msra.mxu0 0.0
        %578 = vmatprep.subr.mxu0 0.0
        %579 = vmatpush1.msra.mxu0 0.0
        %580 = vmatprep.subr.mxu0 0.0
        %581 = vmatpush1.msra.mxu0 0.0
        %582 = vmatprep.subr.mxu0 0.0
        %583 = vmatpush1.msra.mxu0 0.0
        %584 = vmatprep.subr.mxu0 0.0
        %585 = vmatpush1.msra.mxu0 0.0
        %586 = vmatprep.subr.mxu0 0.0
        %587 = vmatpush1.msra.mxu0 0.0
        %588 = vmatprep.subr.mxu0 0.0
        %589 = vmatpush1.msra.mxu0 0.0
        %590 = vmatprep.subr.mxu0 0.0
        %591 = vmatpush1.msra.mxu0 0.0
        %592 = vmatprep.subr.mxu0 0.0
        %593 = vmatpush1.msra.mxu0 0.0
        %594 = vmatprep.subr.mxu0 0.0
        %595 = vmatpush1.msra.mxu0 0.0
        %596 = vmatprep.mubr.f32.mxu0 0.0
        %597 = vmatmul.mubr.f32.gmra.mrb[0].mxu0 %v530
        %v598 = vpop.f32.mrb[0].mxu0
        %v599 = vadd.f32 0.0, %v598
        %v600 = vpop.f32.mrb[0].mxu0
        %601 = vdwg.mxu0
        %v603 = vsel %vm528, %v521, 0
        %605 = vmatprep.subr.mxu0 0.0
        %606 = vmatpush1.msra.mxu0 %v525
        %607 = vmatprep.subr.mxu0 0.0
        %608 = vmatpush1.msra.mxu0 0.0
        %609 = vmatprep.subr.mxu0 0.0
        %610 = vmatpush1.msra.mxu0 0.0
        %611 = vmatprep.subr.mxu0 0.0
        %612 = vmatpush1.msra.mxu0 0.0
        %613 = vmatprep.subr.mxu0 0.0
        %614 = vmatpush1.msra.mxu0 0.0
        %615 = vmatprep.subr.mxu0 0.0
        %616 = vmatpush1.msra.mxu0 0.0
        %617 = vmatprep.subr.mxu0 0.0
        %618 = vmatpush1.msra.mxu0 0.0
        %619 = vmatprep.subr.mxu0 0.0
        %620 = vmatpush1.msra.mxu0 0.0
        %621 = vmatprep.subr.mxu0 0.0
        %622 = vmatpush1.msra.mxu0 0.0
        %623 = vmatprep.subr.mxu0 0.0
        %624 = vmatpush1.msra.mxu0 0.0
        %625 = vmatprep.subr.mxu0 0.0
        %626 = vmatpush1.msra.mxu0 0.0
        %627 = vmatprep.subr.mxu0 0.0
        %628 = vmatpush1.msra.mxu0 0.0
        %629 = vmatprep.subr.mxu0 0.0
        %630 = vmatpush1.msra.mxu0 0.0
        %631 = vmatprep.subr.mxu0 0.0
        %632 = vmatpush1.msra.mxu0 0.0
        %633 = vmatprep.subr.mxu0 0.0
        %634 = vmatpush1.msra.mxu0 0.0
        %635 = vmatprep.subr.mxu0 0.0
        %636 = vmatpush1.msra.mxu0 0.0
        %637 = vmatprep.subr.mxu0 0.0
        %638 = vmatpush1.msra.mxu0 0.0
        %639 = vmatprep.subr.mxu0 0.0
        %640 = vmatpush1.msra.mxu0 0.0
        %641 = vmatprep.subr.mxu0 0.0
        %642 = vmatpush1.msra.mxu0 0.0
        %643 = vmatprep.subr.mxu0 0.0
        %644 = vmatpush1.msra.mxu0 0.0
        %645 = vmatprep.subr.mxu0 0.0
        %646 = vmatpush1.msra.mxu0 0.0
        %647 = vmatprep.subr.mxu0 0.0
        %648 = vmatpush1.msra.mxu0 0.0
        %649 = vmatprep.subr.mxu0 0.0
        %650 = vmatpush1.msra.mxu0 0.0
        %651 = vmatprep.subr.mxu0 0.0
        %652 = vmatpush1.msra.mxu0 0.0
        %653 = vmatprep.subr.mxu0 0.0
        %654 = vmatpush1.msra.mxu0 0.0
        %655 = vmatprep.subr.mxu0 0.0
        %656 = vmatpush1.msra.mxu0 0.0
        %657 = vmatprep.subr.mxu0 0.0
        %658 = vmatpush1.msra.mxu0 0.0
        %659 = vmatprep.subr.mxu0 0.0
        %660 = vmatpush1.msra.mxu0 0.0
        %661 = vmatprep.subr.mxu0 0.0
        %662 = vmatpush1.msra.mxu0 0.0
        %663 = vmatprep.subr.mxu0 0.0
        %664 = vmatpush1.msra.mxu0 0.0
        %665 = vmatprep.subr.mxu0 0.0
        %666 = vmatpush1.msra.mxu0 0.0
        %667 = vmatprep.subr.mxu0 0.0
        %668 = vmatpush1.msra.mxu0 0.0
        %669 = vmatprep.mubr.f32.mxu0 0.0
        %670 = vmatmul.mubr.f32.gmra.mrb[0].mxu0 %v603
        %v671 = vpop.f32.mrb[0].mxu0
        %v672 = vadd.f32 0.0, %v671
        %v673 = vpop.f32.mrb[0].mxu0
        %674 = vdwg.mxu0
        %v676 = vsel %vm528, %v522, 0
        %678 = vmatprep.subr.mxu0 0.0
        %679 = vmatpush1.msra.mxu0 %v526
        %680 = vmatprep.subr.mxu0 0.0
        %681 = vmatpush1.msra.mxu0 0.0
        %682 = vmatprep.subr.mxu0 0.0
        %683 = vmatpush1.msra.mxu0 0.0
        %684 = vmatprep.subr.mxu0 0.0
        %685 = vmatpush1.msra.mxu0 0.0
        %686 = vmatprep.subr.mxu0 0.0
        %687 = vmatpush1.msra.mxu0 0.0
        %688 = vmatprep.subr.mxu0 0.0
        %689 = vmatpush1.msra.mxu0 0.0
        %690 = vmatprep.subr.mxu0 0.0
        %691 = vmatpush1.msra.mxu0 0.0
        %692 = vmatprep.subr.mxu0 0.0
        %693 = vmatpush1.msra.mxu0 0.0
        %694 = vmatprep.subr.mxu0 0.0
        %695 = vmatpush1.msra.mxu0 0.0
        %696 = vmatprep.subr.mxu0 0.0
        %697 = vmatpush1.msra.mxu0 0.0
        %698 = vmatprep.subr.mxu0 0.0
        %699 = vmatpush1.msra.mxu0 0.0
        %700 = vmatprep.subr.mxu0 0.0
        %701 = vmatpush1.msra.mxu0 0.0
        %702 = vmatprep.subr.mxu0 0.0
        %703 = vmatpush1.msra.mxu0 0.0
        %704 = vmatprep.subr.mxu0 0.0
        %705 = vmatpush1.msra.mxu0 0.0
        %706 = vmatprep.subr.mxu0 0.0
        %707 = vmatpush1.msra.mxu0 0.0
        %708 = vmatprep.subr.mxu0 0.0
        %709 = vmatpush1.msra.mxu0 0.0
        %710 = vmatprep.subr.mxu0 0.0
        %711 = vmatpush1.msra.mxu0 0.0
        %712 = vmatprep.subr.mxu0 0.0
        %713 = vmatpush1.msra.mxu0 0.0
        %714 = vmatprep.subr.mxu0 0.0
        %715 = vmatpush1.msra.mxu0 0.0
        %716 = vmatprep.subr.mxu0 0.0
        %717 = vmatpush1.msra.mxu0 0.0
        %718 = vmatprep.subr.mxu0 0.0
        %719 = vmatpush1.msra.mxu0 0.0
        %720 = vmatprep.subr.mxu0 0.0
        %721 = vmatpush1.msra.mxu0 0.0
        %722 = vmatprep.subr.mxu0 0.0
        %723 = vmatpush1.msra.mxu0 0.0
        %724 = vmatprep.subr.mxu0 0.0
        %725 = vmatpush1.msra.mxu0 0.0
        %726 = vmatprep.subr.mxu0 0.0
        %727 = vmatpush1.msra.mxu0 0.0
        %728 = vmatprep.subr.mxu0 0.0
        %729 = vmatpush1.msra.mxu0 0.0
        %730 = vmatprep.subr.mxu0 0.0
        %731 = vmatpush1.msra.mxu0 0.0
        %732 = vmatprep.subr.mxu0 0.0
        %733 = vmatpush1.msra.mxu0 0.0
        %734 = vmatprep.subr.mxu0 0.0
        %735 = vmatpush1.msra.mxu0 0.0
        %736 = vmatprep.subr.mxu0 0.0
        %737 = vmatpush1.msra.mxu0 0.0
        %738 = vmatprep.subr.mxu0 0.0
        %739 = vmatpush1.msra.mxu0 0.0
        %740 = vmatprep.subr.mxu0 0.0
        %741 = vmatpush1.msra.mxu0 0.0
        %742 = vmatprep.mubr.f32.mxu0 0.0
        %743 = vmatmul.mubr.f32.gmra.mrb[0].mxu0 %v676
        %v744 = vpop.f32.mrb[0].mxu0
        %v745 = vadd.f32 0.0, %v744
        %v746 = vpop.f32.mrb[0].mxu0
        %747 = vdwg.mxu0
        %v749 = vsel %vm528, %v523, 0
        %751 = vmatprep.subr.mxu0 0.0
        %752 = vmatpush1.msra.mxu0 %v527
        %753 = vmatprep.subr.mxu0 0.0
        %754 = vmatpush1.msra.mxu0 0.0
        %755 = vmatprep.subr.mxu0 0.0
        %756 = vmatpush1.msra.mxu0 0.0
        %757 = vmatprep.subr.mxu0 0.0
        %758 = vmatpush1.msra.mxu0 0.0
        %759 = vmatprep.subr.mxu0 0.0
        %760 = vmatpush1.msra.mxu0 0.0
        %761 = vmatprep.subr.mxu0 0.0
        %762 = vmatpush1.msra.mxu0 0.0
        %763 = vmatprep.subr.mxu0 0.0
        %764 = vmatpush1.msra.mxu0 0.0
        %765 = vmatprep.subr.mxu0 0.0
        %766 = vmatpush1.msra.mxu0 0.0
        %767 = vmatprep.subr.mxu0 0.0
        %768 = vmatpush1.msra.mxu0 0.0
        %769 = vmatprep.subr.mxu0 0.0
        %770 = vmatpush1.msra.mxu0 0.0
        %771 = vmatprep.subr.mxu0 0.0
        %772 = vmatpush1.msra.mxu0 0.0
        %773 = vmatprep.subr.mxu0 0.0
        %774 = vmatpush1.msra.mxu0 0.0
        %775 = vmatprep.subr.mxu0 0.0
        %776 = vmatpush1.msra.mxu0 0.0
        %777 = vmatprep.subr.mxu0 0.0
        %778 = vmatpush1.msra.mxu0 0.0
        %779 = vmatprep.subr.mxu0 0.0
        %780 = vmatpush1.msra.mxu0 0.0
        %781 = vmatprep.subr.mxu0 0.0
        %782 = vmatpush1.msra.mxu0 0.0
        %783 = vmatprep.subr.mxu0 0.0
        %784 = vmatpush1.msra.mxu0 0.0
        %785 = vmatprep.subr.mxu0 0.0
        %786 = vmatpush1.msra.mxu0 0.0
        %787 = vmatprep.subr.mxu0 0.0
        %788 = vmatpush1.msra.mxu0 0.0
        %789 = vmatprep.subr.mxu0 0.0
        %790 = vmatpush1.msra.mxu0 0.0
        %791 = vmatprep.subr.mxu0 0.0
        %792 = vmatpush1.msra.mxu0 0.0
        %793 = vmatprep.subr.mxu0 0.0
        %794 = vmatpush1.msra.mxu0 0.0
        %795 = vmatprep.subr.mxu0 0.0
        %796 = vmatpush1.msra.mxu0 0.0
        %797 = vmatprep.subr.mxu0 0.0
        %798 = vmatpush1.msra.mxu0 0.0
        %799 = vmatprep.subr.mxu0 0.0
        %800 = vmatpush1.msra.mxu0 0.0
        %801 = vmatprep.subr.mxu0 0.0
        %802 = vmatpush1.msra.mxu0 0.0
        %803 = vmatprep.subr.mxu0 0.0
        %804 = vmatpush1.msra.mxu0 0.0
        %805 = vmatprep.subr.mxu0 0.0
        %806 = vmatpush1.msra.mxu0 0.0
        %807 = vmatprep.subr.mxu0 0.0
        %808 = vmatpush1.msra.mxu0 0.0
        %809 = vmatprep.subr.mxu0 0.0
        %810 = vmatpush1.msra.mxu0 0.0
        %811 = vmatprep.subr.mxu0 0.0
        %812 = vmatpush1.msra.mxu0 0.0
        %813 = vmatprep.subr.mxu0 0.0
        %814 = vmatpush1.msra.mxu0 0.0
        %815 = vmatprep.mubr.f32.mxu0 0.0
        %816 = vmatmul.mubr.f32.gmra.mrb[0].mxu0 %v749
        %v817 = vpop.f32.mrb[0].mxu0
        %v818 = vadd.f32 0.0, %v817
        %v819 = vpop.f32.mrb[0].mxu0
        %820 = vdwg.mxu0
        %v821 = vld [vmem:[%s6] sm:$0x1]
        %v822 = vld [vmem:[%s6 + $0x1] sm:$0x1]
        %v823 = vld [vmem:[%s6 + $0x2] sm:$0x1]
        %v824 = vld [vmem:[%s6 + $0x3] sm:$0x1]
        %v829 = vlaneseq
        %v830 = vshrl.u32 %v829, 7
        %v831 = vsub.s32 0, %v830
        %v832 = vrot.slane %v821, %v831
        %v833 = vlaneseq
        %v834 = vshrl.u32 %v833, 7
        %v835 = vsub.s32 0, %v834
        %v836 = vrot.slane %v822, %v835
        %v837 = vlaneseq
        %v838 = vshrl.u32 %v837, 7
        %v839 = vsub.s32 0, %v838
        %v840 = vrot.slane %v823, %v839
        %v841 = vlaneseq
        %v842 = vshrl.u32 %v841, 7
        %v843 = vsub.s32 0, %v842
        %v844 = vrot.slane %v824, %v843
        %845 = vset.pattern.permute.xlu0 0
        %846 = vperm.xlu0 %845, %v832
        %v847 = vpop.permute.xlu0 %846
        %849 = vset.pattern.permute.xlu0 0
        %850 = vperm.xlu0 %849, %v836
        %v851 = vpop.permute.xlu0 %850
        %853 = vset.pattern.permute.xlu0 0
        %854 = vperm.xlu0 %853, %v840
        %v855 = vpop.permute.xlu0 %854
        %857 = vset.pattern.permute.xlu0 0
        %858 = vperm.xlu0 %857, %v844
        %v859 = vpop.permute.xlu0 %858
        %vm861 = vcmp.gt.f32.partialorder %v518, %v847
        %vm862 = vcmp.gt.f32.partialorder %v518, %v851
        %vm863 = vcmp.gt.f32.partialorder %v518, %v855
        %vm864 = vcmp.gt.f32.partialorder %v518, %v859
        %v865 = vsel %vm861, -1e+09, %v599
        %v866 = vsel %vm862, -1e+09, %v672
        %v867 = vsel %vm863, -1e+09, %v745
        %v868 = vsel %vm864, -1e+09, %v818
        %v869 = vsel %vm528, %v865, -inf
        %870 = vmax.xlane.f32.xlu0 %v869
        %v871 = vpop.xlane.xlu0 %870
        %v872 = vsel %vm528, %v866, -inf
        %873 = vmax.xlane.f32.xlu0 %v872
        %v874 = vpop.xlane.xlu0 %873
        %v875 = vsel %vm528, %v867, -inf
        %876 = vmax.xlane.f32.xlu0 %v875
        %v877 = vpop.xlane.xlu0 %876
        %v878 = vsel %vm528, %v868, -inf
        %879 = vmax.xlane.f32.xlu0 %v878
        %v880 = vpop.xlane.xlu0 %879
        %v881 = vsub.f32 %v865, %v871
        %v882 = vsub.f32 %v866, %v874
        %v883 = vsub.f32 %v867, %v877
        %v884 = vsub.f32 %v868, %v880
        %v885 = vmul.f32 %v881, 1.442695
        %v886 = vpow.pop %v885
        %v887 = vmul.f32 %v882, 1.442695
        %v888 = vpow.pop %v887
        %v889 = vmul.f32 %v883, 1.442695
        %v890 = vpow.pop %v889
        %v891 = vmul.f32 %v884, 1.442695
        %v892 = vpow.pop %v891
        %v893 = vsel %vm528, %v886, 0.0
        %894 = vadd.xlane.f32.xlu0 %v893
        %v895 = vpop.xlane.xlu0 %894
        %v896 = vsel %vm528, %v888, 0.0
        %897 = vadd.xlane.f32.xlu0 %v896
        %v898 = vpop.xlane.xlu0 %897
        %v899 = vsel %vm528, %v890, 0.0
        %900 = vadd.xlane.f32.xlu0 %v899
        %v901 = vpop.xlane.xlu0 %900
        %v902 = vsel %vm528, %v892, 0.0
        %903 = vadd.xlane.f32.xlu0 %v902
        %v904 = vpop.xlane.xlu0 %903
        %v905 = vld [vmem:[#allocation4] sm:$0xff]
        %v906 = vld [vmem:[#allocation4 + $0x8] sm:$0xff]
        %v907 = vld [vmem:[#allocation4 + $0x10] sm:$0xff]
        %v908 = vld [vmem:[#allocation4 + $0x18] sm:$0xff]
        %v910 = vsel %vm528, %v886, 0
        %912 = vmatprep.subr.mxu0 0.0
        %913 = vmatpush1.msra.mxu0 %v905
        %914 = vmatprep.subr.mxu0 0.0
        %915 = vmatpush1.msra.mxu0 0.0
        %916 = vmatprep.subr.mxu0 0.0
        %917 = vmatpush1.msra.mxu0 0.0
        %918 = vmatprep.subr.mxu0 0.0
        %919 = vmatpush1.msra.mxu0 0.0
        %920 = vmatprep.subr.mxu0 0.0
        %921 = vmatpush1.msra.mxu0 0.0
        %922 = vmatprep.subr.mxu0 0.0
        %923 = vmatpush1.msra.mxu0 0.0
        %924 = vmatprep.subr.mxu0 0.0
        %925 = vmatpush1.msra.mxu0 0.0
        %926 = vmatprep.subr.mxu0 0.0
        %927 = vmatpush1.msra.mxu0 0.0
        %928 = vmatprep.subr.mxu0 0.0
        %929 = vmatpush1.msra.mxu0 0.0
        %930 = vmatprep.subr.mxu0 0.0
        %931 = vmatpush1.msra.mxu0 0.0
        %932 = vmatprep.subr.mxu0 0.0
        %933 = vmatpush1.msra.mxu0 0.0
        %934 = vmatprep.subr.mxu0 0.0
        %935 = vmatpush1.msra.mxu0 0.0
        %936 = vmatprep.subr.mxu0 0.0
        %937 = vmatpush1.msra.mxu0 0.0
        %938 = vmatprep.subr.mxu0 0.0
        %939 = vmatpush1.msra.mxu0 0.0
        %940 = vmatprep.subr.mxu0 0.0
        %941 = vmatpush1.msra.mxu0 0.0
        %942 = vmatprep.subr.mxu0 0.0
        %943 = vmatpush1.msra.mxu0 0.0
        %944 = vmatprep.subr.mxu0 0.0
        %945 = vmatpush1.msra.mxu0 0.0
        %946 = vmatprep.subr.mxu0 0.0
        %947 = vmatpush1.msra.mxu0 0.0
        %948 = vmatprep.subr.mxu0 0.0
        %949 = vmatpush1.msra.mxu0 0.0
        %950 = vmatprep.subr.mxu0 0.0
        %951 = vmatpush1.msra.mxu0 0.0
        %952 = vmatprep.subr.mxu0 0.0
        %953 = vmatpush1.msra.mxu0 0.0
        %954 = vmatprep.subr.mxu0 0.0
        %955 = vmatpush1.msra.mxu0 0.0
        %956 = vmatprep.subr.mxu0 0.0
        %957 = vmatpush1.msra.mxu0 0.0
        %958 = vmatprep.subr.mxu0 0.0
        %959 = vmatpush1.msra.mxu0 0.0
        %960 = vmatprep.subr.mxu0 0.0
        %961 = vmatpush1.msra.mxu0 0.0
        %962 = vmatprep.subr.mxu0 0.0
        %963 = vmatpush1.msra.mxu0 0.0
        %964 = vmatprep.subr.mxu0 0.0
        %965 = vmatpush1.msra.mxu0 0.0
        %966 = vmatprep.subr.mxu0 0.0
        %967 = vmatpush1.msra.mxu0 0.0
        %968 = vmatprep.subr.mxu0 0.0
        %969 = vmatpush1.msra.mxu0 0.0
        %970 = vmatprep.subr.mxu0 0.0
        %971 = vmatpush1.msra.mxu0 0.0
        %972 = vmatprep.subr.mxu0 0.0
        %973 = vmatpush1.msra.mxu0 0.0
        %974 = vmatprep.subr.mxu0 0.0
        %975 = vmatpush1.msra.mxu0 0.0
        %976 = vmatprep.mubr.f32.mxu0 0.0
        %977 = vmatmul.mubr.f32.gmra.mrb[0].mxu0 %v910
        %v978 = vpop.f32.mrb[0].mxu0
        %v979 = vadd.f32 0.0, %v978
        %v980 = vpop.f32.mrb[0].mxu0
        %981 = vdwg.mxu0
        %v983 = vsel %vm528, %v888, 0
        %985 = vmatprep.subr.mxu0 0.0
        %986 = vmatpush1.msra.mxu0 %v906
        %987 = vmatprep.subr.mxu0 0.0
        %988 = vmatpush1.msra.mxu0 0.0
        %989 = vmatprep.subr.mxu0 0.0
        %990 = vmatpush1.msra.mxu0 0.0
        %991 = vmatprep.subr.mxu0 0.0
        %992 = vmatpush1.msra.mxu0 0.0
        %993 = vmatprep.subr.mxu0 0.0
        %994 = vmatpush1.msra.mxu0 0.0
        %995 = vmatprep.subr.mxu0 0.0
        %996 = vmatpush1.msra.mxu0 0.0
        %997 = vmatprep.subr.mxu0 0.0
        %998 = vmatpush1.msra.mxu0 0.0
        %999 = vmatprep.subr.mxu0 0.0
        %1000 = vmatpush1.msra.mxu0 0.0
        %1001 = vmatprep.subr.mxu0 0.0
        %1002 = vmatpush1.msra.mxu0 0.0
        %1003 = vmatprep.subr.mxu0 0.0
        %1004 = vmatpush1.msra.mxu0 0.0
        %1005 = vmatprep.subr.mxu0 0.0
        %1006 = vmatpush1.msra.mxu0 0.0
        %1007 = vmatprep.subr.mxu0 0.0
        %1008 = vmatpush1.msra.mxu0 0.0
        %1009 = vmatprep.subr.mxu0 0.0
        %1010 = vmatpush1.msra.mxu0 0.0
        %1011 = vmatprep.subr.mxu0 0.0
        %1012 = vmatpush1.msra.mxu0 0.0
        %1013 = vmatprep.subr.mxu0 0.0
        %1014 = vmatpush1.msra.mxu0 0.0
        %1015 = vmatprep.subr.mxu0 0.0
        %1016 = vmatpush1.msra.mxu0 0.0
        %1017 = vmatprep.subr.mxu0 0.0
        %1018 = vmatpush1.msra.mxu0 0.0
        %1019 = vmatprep.subr.mxu0 0.0
        %1020 = vmatpush1.msra.mxu0 0.0
        %1021 = vmatprep.subr.mxu0 0.0
        %1022 = vmatpush1.msra.mxu0 0.0
        %1023 = vmatprep.subr.mxu0 0.0
        %1024 = vmatpush1.msra.mxu0 0.0
        %1025 = vmatprep.subr.mxu0 0.0
        %1026 = vmatpush1.msra.mxu0 0.0
        %1027 = vmatprep.subr.mxu0 0.0
        %1028 = vmatpush1.msra.mxu0 0.0
        %1029 = vmatprep.subr.mxu0 0.0
        %1030 = vmatpush1.msra.mxu0 0.0
        %1031 = vmatprep.subr.mxu0 0.0
        %1032 = vmatpush1.msra.mxu0 0.0
        %1033 = vmatprep.subr.mxu0 0.0
        %1034 = vmatpush1.msra.mxu0 0.0
        %1035 = vmatprep.subr.mxu0 0.0
        %1036 = vmatpush1.msra.mxu0 0.0
        %1037 = vmatprep.subr.mxu0 0.0
        %1038 = vmatpush1.msra.mxu0 0.0
        %1039 = vmatprep.subr.mxu0 0.0
        %1040 = vmatpush1.msra.mxu0 0.0
        %1041 = vmatprep.subr.mxu0 0.0
        %1042 = vmatpush1.msra.mxu0 0.0
        %1043 = vmatprep.subr.mxu0 0.0
        %1044 = vmatpush1.msra.mxu0 0.0
        %1045 = vmatprep.subr.mxu0 0.0
        %1046 = vmatpush1.msra.mxu0 0.0
        %1047 = vmatprep.subr.mxu0 0.0
        %1048 = vmatpush1.msra.mxu0 0.0
        %1049 = vmatprep.mubr.f32.mxu0 0.0
        %1050 = vmatmul.mubr.f32.gmra.mrb[0].mxu0 %v983
        %v1051 = vpop.f32.mrb[0].mxu0
        %v1052 = vadd.f32 0.0, %v1051
        %v1053 = vpop.f32.mrb[0].mxu0
        %1054 = vdwg.mxu0
        %v1056 = vsel %vm528, %v890, 0
        %1058 = vmatprep.subr.mxu0 0.0
        %1059 = vmatpush1.msra.mxu0 %v907
        %1060 = vmatprep.subr.mxu0 0.0
        %1061 = vmatpush1.msra.mxu0 0.0
        %1062 = vmatprep.subr.mxu0 0.0
        %1063 = vmatpush1.msra.mxu0 0.0
        %1064 = vmatprep.subr.mxu0 0.0
        %1065 = vmatpush1.msra.mxu0 0.0
        %1066 = vmatprep.subr.mxu0 0.0
        %1067 = vmatpush1.msra.mxu0 0.0
        %1068 = vmatprep.subr.mxu0 0.0
        %1069 = vmatpush1.msra.mxu0 0.0
        %1070 = vmatprep.subr.mxu0 0.0
        %1071 = vmatpush1.msra.mxu0 0.0
        %1072 = vmatprep.subr.mxu0 0.0
        %1073 = vmatpush1.msra.mxu0 0.0
        %1074 = vmatprep.subr.mxu0 0.0
        %1075 = vmatpush1.msra.mxu0 0.0
        %1076 = vmatprep.subr.mxu0 0.0
        %1077 = vmatpush1.msra.mxu0 0.0
        %1078 = vmatprep.subr.mxu0 0.0
        %1079 = vmatpush1.msra.mxu0 0.0
        %1080 = vmatprep.subr.mxu0 0.0
        %1081 = vmatpush1.msra.mxu0 0.0
        %1082 = vmatprep.subr.mxu0 0.0
        %1083 = vmatpush1.msra.mxu0 0.0
        %1084 = vmatprep.subr.mxu0 0.0
        %1085 = vmatpush1.msra.mxu0 0.0
        %1086 = vmatprep.subr.mxu0 0.0
        %1087 = vmatpush1.msra.mxu0 0.0
        %1088 = vmatprep.subr.mxu0 0.0
        %1089 = vmatpush1.msra.mxu0 0.0
        %1090 = vmatprep.subr.mxu0 0.0
        %1091 = vmatpush1.msra.mxu0 0.0
        %1092 = vmatprep.subr.mxu0 0.0
        %1093 = vmatpush1.msra.mxu0 0.0
        %1094 = vmatprep.subr.mxu0 0.0
        %1095 = vmatpush1.msra.mxu0 0.0
        %1096 = vmatprep.subr.mxu0 0.0
        %1097 = vmatpush1.msra.mxu0 0.0
        %1098 = vmatprep.subr.mxu0 0.0
        %1099 = vmatpush1.msra.mxu0 0.0
        %1100 = vmatprep.subr.mxu0 0.0
        %1101 = vmatpush1.msra.mxu0 0.0
        %1102 = vmatprep.subr.mxu0 0.0
        %1103 = vmatpush1.msra.mxu0 0.0
        %1104 = vmatprep.subr.mxu0 0.0
        %1105 = vmatpush1.msra.mxu0 0.0
        %1106 = vmatprep.subr.mxu0 0.0
        %1107 = vmatpush1.msra.mxu0 0.0
        %1108 = vmatprep.subr.mxu0 0.0
        %1109 = vmatpush1.msra.mxu0 0.0
        %1110 = vmatprep.subr.mxu0 0.0
        %1111 = vmatpush1.msra.mxu0 0.0
        %1112 = vmatprep.subr.mxu0 0.0
        %1113 = vmatpush1.msra.mxu0 0.0
        %1114 = vmatprep.subr.mxu0 0.0
        %1115 = vmatpush1.msra.mxu0 0.0
        %1116 = vmatprep.subr.mxu0 0.0
        %1117 = vmatpush1.msra.mxu0 0.0
        %1118 = vmatprep.subr.mxu0 0.0
        %1119 = vmatpush1.msra.mxu0 0.0
        %1120 = vmatprep.subr.mxu0 0.0
        %1121 = vmatpush1.msra.mxu0 0.0
        %1122 = vmatprep.mubr.f32.mxu0 0.0
        %1123 = vmatmul.mubr.f32.gmra.mrb[0].mxu0 %v1056
        %v1124 = vpop.f32.mrb[0].mxu0
        %v1125 = vadd.f32 0.0, %v1124
        %v1126 = vpop.f32.mrb[0].mxu0
        %1127 = vdwg.mxu0
        %v1129 = vsel %vm528, %v892, 0
        %1131 = vmatprep.subr.mxu0 0.0
        %1132 = vmatpush1.msra.mxu0 %v908
        %1133 = vmatprep.subr.mxu0 0.0
        %1134 = vmatpush1.msra.mxu0 0.0
        %1135 = vmatprep.subr.mxu0 0.0
        %1136 = vmatpush1.msra.mxu0 0.0
        %1137 = vmatprep.subr.mxu0 0.0
        %1138 = vmatpush1.msra.mxu0 0.0
        %1139 = vmatprep.subr.mxu0 0.0
        %1140 = vmatpush1.msra.mxu0 0.0
        %1141 = vmatprep.subr.mxu0 0.0
        %1142 = vmatpush1.msra.mxu0 0.0
        %1143 = vmatprep.subr.mxu0 0.0
        %1144 = vmatpush1.msra.mxu0 0.0
        %1145 = vmatprep.subr.mxu0 0.0
        %1146 = vmatpush1.msra.mxu0 0.0
        %1147 = vmatprep.subr.mxu0 0.0
        %1148 = vmatpush1.msra.mxu0 0.0
        %1149 = vmatprep.subr.mxu0 0.0
        %1150 = vmatpush1.msra.mxu0 0.0
        %1151 = vmatprep.subr.mxu0 0.0
        %1152 = vmatpush1.msra.mxu0 0.0
        %1153 = vmatprep.subr.mxu0 0.0
        %1154 = vmatpush1.msra.mxu0 0.0
        %1155 = vmatprep.subr.mxu0 0.0
        %1156 = vmatpush1.msra.mxu0 0.0
        %1157 = vmatprep.subr.mxu0 0.0
        %1158 = vmatpush1.msra.mxu0 0.0
        %1159 = vmatprep.subr.mxu0 0.0
        %1160 = vmatpush1.msra.mxu0 0.0
        %1161 = vmatprep.subr.mxu0 0.0
        %1162 = vmatpush1.msra.mxu0 0.0
        %1163 = vmatprep.subr.mxu0 0.0
        %1164 = vmatpush1.msra.mxu0 0.0
        %1165 = vmatprep.subr.mxu0 0.0
        %1166 = vmatpush1.msra.mxu0 0.0
        %1167 = vmatprep.subr.mxu0 0.0
        %1168 = vmatpush1.msra.mxu0 0.0
        %1169 = vmatprep.subr.mxu0 0.0
        %1170 = vmatpush1.msra.mxu0 0.0
        %1171 = vmatprep.subr.mxu0 0.0
        %1172 = vmatpush1.msra.mxu0 0.0
        %1173 = vmatprep.subr.mxu0 0.0
        %1174 = vmatpush1.msra.mxu0 0.0
        %1175 = vmatprep.subr.mxu0 0.0
        %1176 = vmatpush1.msra.mxu0 0.0
        %1177 = vmatprep.subr.mxu0 0.0
        %1178 = vmatpush1.msra.mxu0 0.0
        %1179 = vmatprep.subr.mxu0 0.0
        %1180 = vmatpush1.msra.mxu0 0.0
        %1181 = vmatprep.subr.mxu0 0.0
        %1182 = vmatpush1.msra.mxu0 0.0
        %1183 = vmatprep.subr.mxu0 0.0
        %1184 = vmatpush1.msra.mxu0 0.0
        %1185 = vmatprep.subr.mxu0 0.0
        %1186 = vmatpush1.msra.mxu0 0.0
        %1187 = vmatprep.subr.mxu0 0.0
        %1188 = vmatpush1.msra.mxu0 0.0
        %1189 = vmatprep.subr.mxu0 0.0
        %1190 = vmatpush1.msra.mxu0 0.0
        %1191 = vmatprep.subr.mxu0 0.0
        %1192 = vmatpush1.msra.mxu0 0.0
        %1193 = vmatprep.subr.mxu0 0.0
        %1194 = vmatpush1.msra.mxu0 0.0
        %1195 = vmatprep.mubr.f32.mxu0 0.0
        %1196 = vmatmul.mubr.f32.gmra.mrb[0].mxu0 %v1129
        %v1197 = vpop.f32.mrb[0].mxu0
        %v1198 = vadd.f32 0.0, %v1197
        %v1199 = vpop.f32.mrb[0].mxu0
        %1200 = vdwg.mxu0
        %v1201 = vrcp.pop %v895
        %v1202 = vrcp.pop %v898
        %v1203 = vrcp.pop %v901
        %v1204 = vrcp.pop %v904
        %v1205 = vmul.f32 %v979, %v1201
        %v1206 = vmul.f32 %v1052, %v1202
        %v1207 = vmul.f32 %v1125, %v1203
        %v1208 = vmul.f32 %v1198, %v1204
        %v1209 = vld [vmem:[#allocation10] sm:$0xff]
        %v1210 = vld [vmem:[#allocation10 + $0x8] sm:$0xff]
        %v1211 = vld [vmem:[#allocation10 + $0x10] sm:$0xff]
        %v1212 = vld [vmem:[#allocation10 + $0x18] sm:$0xff]
        %v1214 = vsel %vm528, %v1205, 0
        %1216 = vmatprep.subr.mxu0 0.0
        %1217 = vmatpush1.msra.mxu0 %v1209
        %1218 = vmatprep.subr.mxu0 0.0
        %1219 = vmatpush1.msra.mxu0 0.0
        %1220 = vmatprep.subr.mxu0 0.0
        %1221 = vmatpush1.msra.mxu0 0.0
        %1222 = vmatprep.subr.mxu0 0.0
        %1223 = vmatpush1.msra.mxu0 0.0
        %1224 = vmatprep.subr.mxu0 0.0
        %1225 = vmatpush1.msra.mxu0 0.0
        %1226 = vmatprep.subr.mxu0 0.0
        %1227 = vmatpush1.msra.mxu0 0.0
        %1228 = vmatprep.subr.mxu0 0.0
        %1229 = vmatpush1.msra.mxu0 0.0
        %1230 = vmatprep.subr.mxu0 0.0
        %1231 = vmatpush1.msra.mxu0 0.0
        %1232 = vmatprep.subr.mxu0 0.0
        %1233 = vmatpush1.msra.mxu0 0.0
        %1234 = vmatprep.subr.mxu0 0.0
        %1235 = vmatpush1.msra.mxu0 0.0
        %1236 = vmatprep.subr.mxu0 0.0
        %1237 = vmatpush1.msra.mxu0 0.0
        %1238 = vmatprep.subr.mxu0 0.0
        %1239 = vmatpush1.msra.mxu0 0.0
        %1240 = vmatprep.subr.mxu0 0.0
        %1241 = vmatpush1.msra.mxu0 0.0
        %1242 = vmatprep.subr.mxu0 0.0
        %1243 = vmatpush1.msra.mxu0 0.0
        %1244 = vmatprep.subr.mxu0 0.0
        %1245 = vmatpush1.msra.mxu0 0.0
        %1246 = vmatprep.subr.mxu0 0.0
        %1247 = vmatpush1.msra.mxu0 0.0
        %1248 = vmatprep.subr.mxu0 0.0
        %1249 = vmatpush1.msra.mxu0 0.0
        %1250 = vmatprep.subr.mxu0 0.0
        %1251 = vmatpush1.msra.mxu0 0.0
        %1252 = vmatprep.subr.mxu0 0.0
        %1253 = vmatpush1.msra.mxu0 0.0
        %1254 = vmatprep.subr.mxu0 0.0
        %1255 = vmatpush1.msra.mxu0 0.0
        %1256 = vmatprep.subr.mxu0 0.0
        %1257 = vmatpush1.msra.mxu0 0.0
        %1258 = vmatprep.subr.mxu0 0.0
        %1259 = vmatpush1.msra.mxu0 0.0
        %1260 = vmatprep.subr.mxu0 0.0
        %1261 = vmatpush1.msra.mxu0 0.0
        %1262 = vmatprep.subr.mxu0 0.0
        %1263 = vmatpush1.msra.mxu0 0.0
        %1264 = vmatprep.subr.mxu0 0.0
        %1265 = vmatpush1.msra.mxu0 0.0
        %1266 = vmatprep.subr.mxu0 0.0
        %1267 = vmatpush1.msra.mxu0 0.0
        %1268 = vmatprep.subr.mxu0 0.0
        %1269 = vmatpush1.msra.mxu0 0.0
        %1270 = vmatprep.subr.mxu0 0.0
        %1271 = vmatpush1.msra.mxu0 0.0
        %1272 = vmatprep.subr.mxu0 0.0
        %1273 = vmatpush1.msra.mxu0 0.0
        %1274 = vmatprep.subr.mxu0 0.0
        %1275 = vmatpush1.msra.mxu0 0.0
        %1276 = vmatprep.subr.mxu0 0.0
        %1277 = vmatpush1.msra.mxu0 0.0
        %1278 = vmatprep.subr.mxu0 0.0
        %1279 = vmatpush1.msra.mxu0 0.0
        %1280 = vmatprep.mubr.f32.mxu0 0.0
        %1281 = vmatmul.mubr.f32.gmra.mrb[0].mxu0 %v1214
        %v1282 = vpop.f32.mrb[0].mxu0
        %v1283 = vadd.f32 0.0, %v1282
        %v1284 = vpop.f32.mrb[0].mxu0
        %1285 = vdwg.mxu0
        %v1287 = vsel %vm528, %v1206, 0
        %1289 = vmatprep.subr.mxu0 0.0
        %1290 = vmatpush1.msra.mxu0 %v1210
        %1291 = vmatprep.subr.mxu0 0.0
        %1292 = vmatpush1.msra.mxu0 0.0
        %1293 = vmatprep.subr.mxu0 0.0
        %1294 = vmatpush1.msra.mxu0 0.0
        %1295 = vmatprep.subr.mxu0 0.0
        %1296 = vmatpush1.msra.mxu0 0.0
        %1297 = vmatprep.subr.mxu0 0.0
        %1298 = vmatpush1.msra.mxu0 0.0
        %1299 = vmatprep.subr.mxu0 0.0
        %1300 = vmatpush1.msra.mxu0 0.0
        %1301 = vmatprep.subr.mxu0 0.0
        %1302 = vmatpush1.msra.mxu0 0.0
        %1303 = vmatprep.subr.mxu0 0.0
        %1304 = vmatpush1.msra.mxu0 0.0
        %1305 = vmatprep.subr.mxu0 0.0
        %1306 = vmatpush1.msra.mxu0 0.0
        %1307 = vmatprep.subr.mxu0 0.0
        %1308 = vmatpush1.msra.mxu0 0.0
        %1309 = vmatprep.subr.mxu0 0.0
        %1310 = vmatpush1.msra.mxu0 0.0
        %1311 = vmatprep.subr.mxu0 0.0
        %1312 = vmatpush1.msra.mxu0 0.0
        %1313 = vmatprep.subr.mxu0 0.0
        %1314 = vmatpush1.msra.mxu0 0.0
        %1315 = vmatprep.subr.mxu0 0.0
        %1316 = vmatpush1.msra.mxu0 0.0
        %1317 = vmatprep.subr.mxu0 0.0
        %1318 = vmatpush1.msra.mxu0 0.0
        %1319 = vmatprep.subr.mxu0 0.0
        %1320 = vmatpush1.msra.mxu0 0.0
        %1321 = vmatprep.subr.mxu0 0.0
        %1322 = vmatpush1.msra.mxu0 0.0
        %1323 = vmatprep.subr.mxu0 0.0
        %1324 = vmatpush1.msra.mxu0 0.0
        %1325 = vmatprep.subr.mxu0 0.0
        %1326 = vmatpush1.msra.mxu0 0.0
        %1327 = vmatprep.subr.mxu0 0.0
        %1328 = vmatpush1.msra.mxu0 0.0
        %1329 = vmatprep.subr.mxu0 0.0
        %1330 = vmatpush1.msra.mxu0 0.0
        %1331 = vmatprep.subr.mxu0 0.0
        %1332 = vmatpush1.msra.mxu0 0.0
        %1333 = vmatprep.subr.mxu0 0.0
        %1334 = vmatpush1.msra.mxu0 0.0
        %1335 = vmatprep.subr.mxu0 0.0
        %1336 = vmatpush1.msra.mxu0 0.0
        %1337 = vmatprep.subr.mxu0 0.0
        %1338 = vmatpush1.msra.mxu0 0.0
        %1339 = vmatprep.subr.mxu0 0.0
        %1340 = vmatpush1.msra.mxu0 0.0
        %1341 = vmatprep.subr.mxu0 0.0
        %1342 = vmatpush1.msra.mxu0 0.0
        %1343 = vmatprep.subr.mxu0 0.0
        %1344 = vmatpush1.msra.mxu0 0.0
        %1345 = vmatprep.subr.mxu0 0.0
        %1346 = vmatpush1.msra.mxu0 0.0
        %1347 = vmatprep.subr.mxu0 0.0
        %1348 = vmatpush1.msra.mxu0 0.0
        %1349 = vmatprep.subr.mxu0 0.0
        %1350 = vmatpush1.msra.mxu0 0.0
        %1351 = vmatprep.subr.mxu0 0.0
        %1352 = vmatpush1.msra.mxu0 0.0
        %1353 = vmatprep.mubr.f32.mxu0 0.0
        %1354 = vmatmul.mubr.f32.gmra.mrb[0].mxu0 %v1287
        %v1355 = vpop.f32.mrb[0].mxu0
        %v1356 = vadd.f32 0.0, %v1355
        %v1357 = vpop.f32.mrb[0].mxu0
        %1358 = vdwg.mxu0
        %v1360 = vsel %vm528, %v1207, 0
        %1362 = vmatprep.subr.mxu0 0.0
        %1363 = vmatpush1.msra.mxu0 %v1211
        %1364 = vmatprep.subr.mxu0 0.0
        %1365 = vmatpush1.msra.mxu0 0.0
        %1366 = vmatprep.subr.mxu0 0.0
        %1367 = vmatpush1.msra.mxu0 0.0
        %1368 = vmatprep.subr.mxu0 0.0
        %1369 = vmatpush1.msra.mxu0 0.0
        %1370 = vmatprep.subr.mxu0 0.0
        %1371 = vmatpush1.msra.mxu0 0.0
        %1372 = vmatprep.subr.mxu0 0.0
        %1373 = vmatpush1.msra.mxu0 0.0
        %1374 = vmatprep.subr.mxu0 0.0
        %1375 = vmatpush1.msra.mxu0 0.0
        %1376 = vmatprep.subr.mxu0 0.0
        %1377 = vmatpush1.msra.mxu0 0.0
        %1378 = vmatprep.subr.mxu0 0.0
        %1379 = vmatpush1.msra.mxu0 0.0
        %1380 = vmatprep.subr.mxu0 0.0
        %1381 = vmatpush1.msra.mxu0 0.0
        %1382 = vmatprep.subr.mxu0 0.0
        %1383 = vmatpush1.msra.mxu0 0.0
        %1384 = vmatprep.subr.mxu0 0.0
        %1385 = vmatpush1.msra.mxu0 0.0
        %1386 = vmatprep.subr.mxu0 0.0
        %1387 = vmatpush1.msra.mxu0 0.0
        %1388 = vmatprep.subr.mxu0 0.0
        %1389 = vmatpush1.msra.mxu0 0.0
        %1390 = vmatprep.subr.mxu0 0.0
        %1391 = vmatpush1.msra.mxu0 0.0
        %1392 = vmatprep.subr.mxu0 0.0
        %1393 = vmatpush1.msra.mxu0 0.0
        %1394 = vmatprep.subr.mxu0 0.0
        %1395 = vmatpush1.msra.mxu0 0.0
        %1396 = vmatprep.subr.mxu0 0.0
        %1397 = vmatpush1.msra.mxu0 0.0
        %1398 = vmatprep.subr.mxu0 0.0
        %1399 = vmatpush1.msra.mxu0 0.0
        %1400 = vmatprep.subr.mxu0 0.0
        %1401 = vmatpush1.msra.mxu0 0.0
        %1402 = vmatprep.subr.mxu0 0.0
        %1403 = vmatpush1.msra.mxu0 0.0
        %1404 = vmatprep.subr.mxu0 0.0
        %1405 = vmatpush1.msra.mxu0 0.0
        %1406 = vmatprep.subr.mxu0 0.0
        %1407 = vmatpush1.msra.mxu0 0.0
        %1408 = vmatprep.subr.mxu0 0.0
        %1409 = vmatpush1.msra.mxu0 0.0
        %1410 = vmatprep.subr.mxu0 0.0
        %1411 = vmatpush1.msra.mxu0 0.0
        %1412 = vmatprep.subr.mxu0 0.0
        %1413 = vmatpush1.msra.mxu0 0.0
        %1414 = vmatprep.subr.mxu0 0.0
        %1415 = vmatpush1.msra.mxu0 0.0
        %1416 = vmatprep.subr.mxu0 0.0
        %1417 = vmatpush1.msra.mxu0 0.0
        %1418 = vmatprep.subr.mxu0 0.0
        %1419 = vmatpush1.msra.mxu0 0.0
        %1420 = vmatprep.subr.mxu0 0.0
        %1421 = vmatpush1.msra.mxu0 0.0
        %1422 = vmatprep.subr.mxu0 0.0
        %1423 = vmatpush1.msra.mxu0 0.0
        %1424 = vmatprep.subr.mxu0 0.0
        %1425 = vmatpush1.msra.mxu0 0.0
        %1426 = vmatprep.mubr.f32.mxu0 0.0
        %1427 = vmatmul.mubr.f32.gmra.mrb[0].mxu0 %v1360
        %v1428 = vpop.f32.mrb[0].mxu0
        %v1429 = vadd.f32 0.0, %v1428
        %v1430 = vpop.f32.mrb[0].mxu0
        %1431 = vdwg.mxu0
        %v1433 = vsel %vm528, %v1208, 0
        %1435 = vmatprep.subr.mxu0 0.0
        %1436 = vmatpush1.msra.mxu0 %v1212
        %1437 = vmatprep.subr.mxu0 0.0
        %1438 = vmatpush1.msra.mxu0 0.0
        %1439 = vmatprep.subr.mxu0 0.0
        %1440 = vmatpush1.msra.mxu0 0.0
        %1441 = vmatprep.subr.mxu0 0.0
        %1442 = vmatpush1.msra.mxu0 0.0
        %1443 = vmatprep.subr.mxu0 0.0
        %1444 = vmatpush1.msra.mxu0 0.0
        %1445 = vmatprep.subr.mxu0 0.0
        %1446 = vmatpush1.msra.mxu0 0.0
        %1447 = vmatprep.subr.mxu0 0.0
        %1448 = vmatpush1.msra.mxu0 0.0
        %1449 = vmatprep.subr.mxu0 0.0
        %1450 = vmatpush1.msra.mxu0 0.0
        %1451 = vmatprep.subr.mxu0 0.0
        %1452 = vmatpush1.msra.mxu0 0.0
        %1453 = vmatprep.subr.mxu0 0.0
        %1454 = vmatpush1.msra.mxu0 0.0
        %1455 = vmatprep.subr.mxu0 0.0
        %1456 = vmatpush1.msra.mxu0 0.0
        %1457 = vmatprep.subr.mxu0 0.0
        %1458 = vmatpush1.msra.mxu0 0.0
        %1459 = vmatprep.subr.mxu0 0.0
        %1460 = vmatpush1.msra.mxu0 0.0
        %1461 = vmatprep.subr.mxu0 0.0
        %1462 = vmatpush1.msra.mxu0 0.0
        %1463 = vmatprep.subr.mxu0 0.0
        %1464 = vmatpush1.msra.mxu0 0.0
        %1465 = vmatprep.subr.mxu0 0.0
        %1466 = vmatpush1.msra.mxu0 0.0
        %1467 = vmatprep.subr.mxu0 0.0
        %1468 = vmatpush1.msra.mxu0 0.0
        %1469 = vmatprep.subr.mxu0 0.0
        %1470 = vmatpush1.msra.mxu0 0.0
        %1471 = vmatprep.subr.mxu0 0.0
        %1472 = vmatpush1.msra.mxu0 0.0
        %1473 = vmatprep.subr.mxu0 0.0
        %1474 = vmatpush1.msra.mxu0 0.0
        %1475 = vmatprep.subr.mxu0 0.0
        %1476 = vmatpush1.msra.mxu0 0.0
        %1477 = vmatprep.subr.mxu0 0.0
        %1478 = vmatpush1.msra.mxu0 0.0
        %1479 = vmatprep.subr.mxu0 0.0
        %1480 = vmatpush1.msra.mxu0 0.0
        %1481 = vmatprep.subr.mxu0 0.0
        %1482 = vmatpush1.msra.mxu0 0.0
        %1483 = vmatprep.subr.mxu0 0.0
        %1484 = vmatpush1.msra.mxu0 0.0
        %1485 = vmatprep.subr.mxu0 0.0
        %1486 = vmatpush1.msra.mxu0 0.0
        %1487 = vmatprep.subr.mxu0 0.0
        %1488 = vmatpush1.msra.mxu0 0.0
        %1489 = vmatprep.subr.mxu0 0.0
        %1490 = vmatpush1.msra.mxu0 0.0
        %1491 = vmatprep.subr.mxu0 0.0
        %1492 = vmatpush1.msra.mxu0 0.0
        %1493 = vmatprep.subr.mxu0 0.0
        %1494 = vmatpush1.msra.mxu0 0.0
        %1495 = vmatprep.subr.mxu0 0.0
        %1496 = vmatpush1.msra.mxu0 0.0
        %1497 = vmatprep.subr.mxu0 0.0
        %1498 = vmatpush1.msra.mxu0 0.0
        %1499 = vmatprep.mubr.f32.mxu0 0.0
        %1500 = vmatmul.mubr.f32.gmra.mrb[0].mxu0 %v1433
        %v1501 = vpop.f32.mrb[0].mxu0
        %v1502 = vadd.f32 0.0, %v1501
        %v1503 = vpop.f32.mrb[0].mxu0
        %1504 = vdwg.mxu0
        %vm1505 = vcmask 261120
        %v1506 = vsel %vm1505, %v1283, 0.0
        %v1507 = vsel %vm1505, %v1356, 0.0
        %v1508 = vadd.f32 %v1506, %v1507
        %v1509 = vsel %vm1505, %v1429, 0.0
        %v1510 = vadd.f32 %v1508, %v1509
        %v1511 = vsel %vm1505, %v1502, 0.0
        %v1512 = vadd.f32 %v1510, %v1511
        %v1513 = vadd.f32 %v1512, 0.0
        %v1514 = vld [vmem:[%s4] sm:$0x1]
        %v1516 = vlaneseq
        %v1517 = vshrl.u32 %v1516, 7
        %v1518 = vsub.s32 0, %v1517
        %v1519 = vrot.slane %v1514, %v1518
        %v1521 = vadd.f32 %v1513, %v1519
        %1522 = vst.msk [vmem:[%s340] sm:$0xff] %vm1505, %v1521
        %s1523 = sand.u32 %s204, 1
        %s1524 = scalar_lea.sflag [#allocation7], %s1523
        %s1525 = sand.u32 %s204, 1
        %s1526 = smul.addr %s1525, 8
        %s1527 = scalar_lea.vmem [#allocation11], %s1526
        // Predicated region
        $region65: #{tpu_custom_call.1} parent=47 // pred_check
          %p1528 = pneg %p214
        $region66: #{tpu_custom_call.1} parent=47 // pred_check_branch
          %1530 = sbr.rel (%p1528) target = $region68
        $region67: #{tpu_custom_call.1} parent=47 // pred_region
          %s1532 = ssub.s32 128, 128
          %1533 = vsyncadd %s1524, %s1532
          %s1534 = sadd.s32 %s28, %s27
          %s1535 = smul.addr %s1534, 128
          %s1536 = scalar_lea.hbm %s7, %s1535
          %s1538 = sshll.u32 %s1527, 4
          %s1539 = int_to_ptr.vmem [resolvable:$true] %s1538
          %1541 = dma.vmem_to_hbm [thread:$0]  %s1539, 128, %s1536, %s1524
        $region68: #{tpu_custom_call.1} parent=47 // pred_fallthru
          _
      $region48: #{tpu_custom_call.1} parent=5 // pred_fallthru
        _
      %p1542 = scmp.le.s32.totalorder 2, %s18
      // Predicated region
      $region69: #{tpu_custom_call.1} parent=5 // pred_check
        %p1543 = pneg %p1542
      $region70: #{tpu_custom_call.1} parent=5 // pred_check_branch
        %1545 = sbr.rel (%p1543) target = $region72
      $region71: #{tpu_custom_call.1} parent=5 // pred_region
        %s1546 = ssub.s32 %s18, 2
        // Predicated region
        $region73: #{tpu_custom_call.1} parent=71 // pred_check
          %p1547 = pneg %p220
        $region74: #{tpu_custom_call.1} parent=71 // pred_check_branch
          %1549 = sbr.rel (%p1547) target = $region76
        $region75: #{tpu_custom_call.1} parent=71 // pred_region
          %s1550 = sand.u32 %s205, 1
          %s1551 = scalar_lea.sflag [#allocation7], %s1550
          %s1552 = sand.u32 %s205, 1
          %s1553 = smul.addr %s1552, 8
          %s1554 = scalar_lea.vmem [#allocation11], %s1553
          %1555 = dma.done %s1551, 128
        $region76: #{tpu_custom_call.1} parent=71 // pred_fallthru
          _
      $region72: #{tpu_custom_call.1} parent=5 // pred_fallthru
        _
    $region6: #{tpu_custom_call.1} parent=1 // loop_footer
      %s22 = sadd.s32 1, %s18
    $region7: #{tpu_custom_call.1} parent=1 // loop_footer_branch
      %17 = sbr.rel target = $region3
    $region8: #{tpu_custom_call.1} parent=1 // loop_exit
      _
    %1556 = vsyncpa [#allocation6], 1
    %s1557 = scalar_lea.sflag [#allocation6], 1
    %1558 = vsyncpa %s1557, 1
    %1559 = vsyncpa [#allocation9], 1
    %1560 = vsyncpa [#allocation7], 1
    %s1561 = scalar_lea.sflag [#allocation7], 1
    %1562 = vsyncpa %s1561, 1

</llo_original>
